<compile_context>
chip_gen: v7x
topology: tpu7x:2x2x1
jax: 0.10.0
libtpu: 0.0.40
codegen_flags: <defaults>
</compile_context>

<pallas_src>
import jax
import jax.numpy as jnp
from jax.experimental import pallas as pl
from jax.experimental.pallas import tpu as pltpu


# ----------------------------------------------------------------------------
# Pallas kernel: 4x (GraphConv+BN+ReLU) -> global max pool -> lin1+ReLU ->
#                lin2 -> sigmoid
# ----------------------------------------------------------------------------
def model6_kernel(x_ref, a_ref, pbias_ref, wconv_ref, bconv_ref,
                  mlp1_ref, mlp2_ref, out_ref):
    a = a_ref[...]                       # [N, N] dense weighted adjacency
    h = x_ref[...]                       # [N, H] (features zero-padded to H)
    N, H = x_ref.shape
    num_layers = wconv_ref.shape[0]
    B = pbias_ref.shape[1]

    # 4x GraphConv (BN folded) + ReLU.
    # PyG GraphConv: out = (sum_j e_ji x_j) @ Wr + b + x @ Ws
    for i in range(num_layers):
        agg = jnp.dot(a, h, preferred_element_type=jnp.float32)      # [N, H]
        w = wconv_ref[i]                                             # [2H, H]
        wr = w[:H, :]                                                # [H, H]
        ws = w[H:, :]                                                # [H, H]
        b = bconv_ref[pl.ds(i, 1), :]                                # [1, H]
        h = (jnp.dot(agg, wr, preferred_element_type=jnp.float32)
             + jnp.dot(h, ws, preferred_element_type=jnp.float32)
             + b)
        h = jnp.maximum(h, 0.0)

    # global_max_pool: additive -1e30 bias (node-major [N, B]) for non-member
    # nodes, then max over the node (sublane) axis, one graph at a time.
    pooled_rows = []
    for g in range(B):
        masked = h + pbias_ref[:, pl.ds(g, 1)]                       # [N, H]
        pooled_rows.append(jnp.max(masked, axis=0, keepdims=True))   # [1, H]
    pooled = jnp.concatenate(pooled_rows, axis=0)                    # [B, H]

    # TODO(synk): dropout is identity in eval mode (self.training == False).

    # lin1 + ReLU (weight rows 0..H-1, bias row H)
    wl1 = mlp1_ref[pl.ds(0, H), :]                                   # [H, 16]
    bl1 = mlp1_ref[pl.ds(H, 1), :]                                   # [1, 16]
    z1 = jnp.dot(pooled, wl1, preferred_element_type=jnp.float32) + bl1
    z1 = jnp.maximum(z1, 0.0)                                        # [B, 16]

    # lin2 + sigmoid: K=16, N=1 -> VPU multiply + lane reduce, no MXU pass.
    wl2 = mlp2_ref[:, pl.ds(0, 16)]                                  # [1, 16]
    bl2 = mlp2_ref[:, pl.ds(16, 1)]                                  # [1, 1]
    z2 = jnp.sum(z1 * wl2, axis=1, keepdims=True) + bl2              # [B, 1]
    out_ref[...] = 1.0 / (1.0 + jnp.exp(-z2))


def model6_pallas(x_pad, adj, pool_bias_t, w_conv, b_conv, mlp1, mlp2):
    B = pool_bias_t.shape[1]
    vmem = pl.BlockSpec(memory_space=pltpu.MemorySpace.VMEM)
    return pl.pallas_call(
        model6_kernel,
        out_shape=jax.ShapeDtypeStruct((B, 1), jnp.float32),
        in_specs=[vmem] * 7,
        out_specs=vmem,
        compiler_params=pltpu.CompilerParams(vmem_limit_bytes=32 * 1024 * 1024),
    )(x_pad, adj, pool_bias_t, w_conv, b_conv, mlp1, mlp2)


# ----------------------------------------------------------------------------
# Plain-JAX glue: parameter init, BN folding / packing, adjacency, pool mask,
# reference forward.
# ----------------------------------------------------------------------------
def uniform_init(key, shape, fan_in):
    bound = 1.0 / jnp.sqrt(jnp.float32(fan_in))
    return jax.random.uniform(key, shape, jnp.float32, -bound, bound)


def make_params(key, f_in, hidden, eps=1e-5):
    """Raw (un-folded) parameters, mirroring PyTorch init at eval time."""
    dims = [(f_in, hidden)] + [(hidden, hidden)] * 3
    keys = jax.random.split(key, 3 * 4 + 4)
    k = 0
    # BN eval mode at init: running_mean=0, running_var=1, gamma=1, beta=0.
    bn_scale = jnp.full((hidden,), 1.0 / jnp.sqrt(1.0 + eps), jnp.float32)
    bn_shift = jnp.zeros((hidden,), jnp.float32)
    conv = []
    for (cin, cout) in dims:
        wr = uniform_init(keys[k], (cin, cout), cin); k += 1   # lin_rel.weight^T
        br = uniform_init(keys[k], (cout,), cin);     k += 1   # lin_rel.bias
        ws = uniform_init(keys[k], (cin, cout), cin); k += 1   # lin_root.weight^T (no bias)
        conv.append((wr, br, ws, bn_scale, bn_shift))
    wl1 = uniform_init(keys[k], (hidden, 16), hidden); k += 1
    bl1 = uniform_init(keys[k], (16,), hidden);        k += 1
    wl2 = uniform_init(keys[k], (16, 1), 16);          k += 1
    bl2 = uniform_init(keys[k], (1,), 16);             k += 1
    return conv, (wl1, bl1, wl2, bl2)


def pack_params(conv, mlp, hidden):
    """Fold BN into weights, pad layer-1 input channels to `hidden`, stack."""
    w_layers, b_layers = [], []
    for (wr, br, ws, sc, sh) in conv:
        cin = wr.shape[0]
        wr_f = wr * sc[None, :]            # fold BN scale into columns
        ws_f = ws * sc[None, :]
        b_f = br * sc + sh                 # folded bias
        wr_p = jnp.zeros((hidden, hidden), jnp.float32).at[:cin, :].set(wr_f)
        ws_p = jnp.zeros((hidden, hidden), jnp.float32).at[:cin, :].set(ws_f)
        w_layers.append(jnp.concatenate([wr_p, ws_p], axis=0))   # [2H, H]
        b_layers.append(b_f)                                     # [H]
    w_conv = jnp.stack(w_layers, axis=0)                         # [L, 2H, H]
    b_conv = jnp.stack(b_layers, axis=0)                         # [L, H]
    wl1, bl1, wl2, bl2 = mlp
    mlp1 = jnp.concatenate([wl1, bl1[None, :]], axis=0)          # [H+1, 16]
    mlp2 = jnp.concatenate(
        [wl2[:, 0], bl2, jnp.zeros((15,), jnp.float32)], axis=0
    )[None, :]                                                   # [1, 32]
    return w_conv, b_conv, mlp1, mlp2


def dense_adjacency(edge_index, edge_attr, num_nodes):
    # A[target, source] = edge weight (duplicates summed, matching aggr='add')
    a = jnp.zeros((num_nodes, num_nodes), jnp.float32)
    return a.at[edge_index[1], edge_index[0]].add(edge_attr)


def pool_mask(batch, num_graphs):
    return (batch[None, :] == jnp.arange(num_graphs)[:, None]).astype(jnp.float32)


def reference_forward(x, adj, mask, conv, mlp):
    h = x
    for (wr, br, ws, sc, sh) in conv:
        h = adj @ h @ wr + br[None, :] + h @ ws
        h = h * sc[None, :] + sh[None, :]
        h = jnp.maximum(h, 0.0)
    pooled = jnp.max(jnp.where(mask[:, :, None] > 0, h[None, :, :], -1e30), axis=1)
    wl1, bl1, wl2, bl2 = mlp
    z1 = jnp.maximum(pooled @ wl1 + bl1[None, :], 0.0)
    z2 = z1 @ wl2 + bl2[None, :]
    return 1.0 / (1.0 + jnp.exp(-z2))


if __name__ == "__main__":
    key = jax.random.PRNGKey(0)
    k_x, k_e, k_w, k_p = jax.random.split(key, 4)

    num_nodes = 32      # N
    features = 8        # features_channels
    hidden = 32         # hidden_channels
    num_graphs = 2      # B
    num_edges = 64      # E

    x = jax.random.normal(k_x, (num_nodes, features), jnp.float32)
    edge_index = jax.random.randint(k_e, (2, num_edges), 0, num_nodes)
    edge_attr = jax.random.uniform(k_w, (num_edges,), jnp.float32, 0.1, 1.0)
    batch = jnp.concatenate(
        [jnp.zeros(num_nodes // 2, jnp.int32), jnp.ones(num_nodes // 2, jnp.int32)]
    )

    adj = dense_adjacency(edge_index, edge_attr, num_nodes)
    mask = pool_mask(batch, num_graphs)

    conv, mlp = make_params(k_p, features, hidden)
    w_conv, b_conv, mlp1, mlp2 = pack_params(conv, mlp, hidden)

    # Kernel-side inputs: zero-padded node features, node-major additive pool bias.
    x_pad = jnp.zeros((num_nodes, hidden), jnp.float32).at[:, :features].set(x)
    pool_bias_t = jnp.where(mask > 0, 0.0, -1e30).astype(jnp.float32).T   # [N, B]

    out = model6_pallas(x_pad, adj, pool_bias_t, w_conv, b_conv, mlp1, mlp2)
    out = jax.block_until_ready(out)

    ref = reference_forward(x, adj, mask, conv, mlp)
    assert out.shape == (num_graphs, 1)
    assert jnp.allclose(out, ref, atol=5e-5, rtol=5e-5)
    print("KERNEL_OK")
</pallas_src>

<mosaic_0001>
module attributes {stable_mosaic.version = 11 : i64} {
  func.func @model6_kernel(%arg0: memref<32x32xf32, #tpu.memory_space<vmem>>, %arg1: memref<32x32xf32, #tpu.memory_space<vmem>>, %arg2: memref<32x2xf32, #tpu.memory_space<vmem>>, %arg3: memref<4x64x32xf32, #tpu.memory_space<vmem>>, %arg4: memref<4x32xf32, #tpu.memory_space<vmem>>, %arg5: memref<33x16xf32, #tpu.memory_space<vmem>>, %arg6: memref<1x32xf32, #tpu.memory_space<vmem>>, %arg7: memref<2x1xf32, #tpu.memory_space<vmem>>) attributes {dimension_semantics = [], scalar_prefetch = 0 : i64, scratch_operands = 0 : i64, tpu.core_type = #tpu.core_type<tc>} {
    %c0 = arith.constant 0 : index
    %c0_0 = arith.constant 0 : index
    %0 = vector.load %arg1[%c0, %c0_0] : memref<32x32xf32, #tpu.memory_space<vmem>>, vector<32x32xf32>
    %c0_1 = arith.constant 0 : index
    %c0_2 = arith.constant 0 : index
    %1 = vector.load %arg0[%c0_1, %c0_2] : memref<32x32xf32, #tpu.memory_space<vmem>>, vector<32x32xf32>
    %cst = arith.constant dense<0.000000e+00> : vector<32x32xf32>
    %2 = tpu.matmul %0, %1, %cst {dimension_numbers = #tpu.dot_dimension_numbers<[1], [0], [0], [1], [0, 0, 1, 1], [], []>} : vector<32x32xf32>, vector<32x32xf32>, vector<32x32xf32> -> vector<32x32xf32>
    %c0_3 = arith.constant 0 : index
    %c0_4 = arith.constant 0 : index
    %c0_5 = arith.constant 0 : index
    %3 = vector.load %arg3[%c0_3, %c0_4, %c0_5] : memref<4x64x32xf32, #tpu.memory_space<vmem>>, vector<1x64x32xf32>
    %4 = vector.shape_cast %3 : vector<1x64x32xf32> to vector<64x32xf32>
    %5 = vector.extract_strided_slice %4 {offsets = [0, 0], sizes = [32, 32], strides = [1, 1]} : vector<64x32xf32> to vector<32x32xf32>
    %6 = vector.extract_strided_slice %4 {offsets = [32, 0], sizes = [32, 32], strides = [1, 1]} : vector<64x32xf32> to vector<32x32xf32>
    %c0_6 = arith.constant 0 : index
    %c0_7 = arith.constant 0 : index
    %7 = vector.load %arg4[%c0_6, %c0_7] : memref<4x32xf32, #tpu.memory_space<vmem>>, vector<1x32xf32>
    %cst_8 = arith.constant dense<0.000000e+00> : vector<32x32xf32>
    %8 = tpu.matmul %2, %5, %cst_8 {dimension_numbers = #tpu.dot_dimension_numbers<[1], [0], [0], [1], [0, 0, 1, 1], [], []>} : vector<32x32xf32>, vector<32x32xf32>, vector<32x32xf32> -> vector<32x32xf32>
    %cst_9 = arith.constant dense<0.000000e+00> : vector<32x32xf32>
    %9 = tpu.matmul %1, %6, %cst_9 {dimension_numbers = #tpu.dot_dimension_numbers<[1], [0], [0], [1], [0, 0, 1, 1], [], []>} : vector<32x32xf32>, vector<32x32xf32>, vector<32x32xf32> -> vector<32x32xf32>
    %10 = arith.addf %8, %9 : vector<32x32xf32>
    %11 = vector.broadcast %7 : vector<1x32xf32> to vector<32x32xf32>
    %12 = arith.addf %10, %11 : vector<32x32xf32>
    %cst_10 = arith.constant 0.000000e+00 : f32
    %13 = vector.broadcast %cst_10 : f32 to vector<32x32xf32>
    %14 = arith.maximumf %12, %13 : vector<32x32xf32>
    %cst_11 = arith.constant dense<0.000000e+00> : vector<32x32xf32>
    %15 = tpu.matmul %0, %14, %cst_11 {dimension_numbers = #tpu.dot_dimension_numbers<[1], [0], [0], [1], [0, 0, 1, 1], [], []>} : vector<32x32xf32>, vector<32x32xf32>, vector<32x32xf32> -> vector<32x32xf32>
    %c1 = arith.constant 1 : index
    %c0_12 = arith.constant 0 : index
    %c0_13 = arith.constant 0 : index
    %16 = vector.load %arg3[%c1, %c0_12, %c0_13] : memref<4x64x32xf32, #tpu.memory_space<vmem>>, vector<1x64x32xf32>
    %17 = vector.shape_cast %16 : vector<1x64x32xf32> to vector<64x32xf32>
    %18 = vector.extract_strided_slice %17 {offsets = [0, 0], sizes = [32, 32], strides = [1, 1]} : vector<64x32xf32> to vector<32x32xf32>
    %19 = vector.extract_strided_slice %17 {offsets = [32, 0], sizes = [32, 32], strides = [1, 1]} : vector<64x32xf32> to vector<32x32xf32>
    %c1_14 = arith.constant 1 : index
    %c0_15 = arith.constant 0 : index
    %20 = vector.load %arg4[%c1_14, %c0_15] : memref<4x32xf32, #tpu.memory_space<vmem>>, vector<1x32xf32>
    %cst_16 = arith.constant dense<0.000000e+00> : vector<32x32xf32>
    %21 = tpu.matmul %15, %18, %cst_16 {dimension_numbers = #tpu.dot_dimension_numbers<[1], [0], [0], [1], [0, 0, 1, 1], [], []>} : vector<32x32xf32>, vector<32x32xf32>, vector<32x32xf32> -> vector<32x32xf32>
    %cst_17 = arith.constant dense<0.000000e+00> : vector<32x32xf32>
    %22 = tpu.matmul %14, %19, %cst_17 {dimension_numbers = #tpu.dot_dimension_numbers<[1], [0], [0], [1], [0, 0, 1, 1], [], []>} : vector<32x32xf32>, vector<32x32xf32>, vector<32x32xf32> -> vector<32x32xf32>
    %23 = arith.addf %21, %22 : vector<32x32xf32>
    %24 = vector.broadcast %20 : vector<1x32xf32> to vector<32x32xf32>
    %25 = arith.addf %23, %24 : vector<32x32xf32>
    %cst_18 = arith.constant 0.000000e+00 : f32
    %26 = vector.broadcast %cst_18 : f32 to vector<32x32xf32>
    %27 = arith.maximumf %25, %26 : vector<32x32xf32>
    %cst_19 = arith.constant dense<0.000000e+00> : vector<32x32xf32>
    %28 = tpu.matmul %0, %27, %cst_19 {dimension_numbers = #tpu.dot_dimension_numbers<[1], [0], [0], [1], [0, 0, 1, 1], [], []>} : vector<32x32xf32>, vector<32x32xf32>, vector<32x32xf32> -> vector<32x32xf32>
    %c2 = arith.constant 2 : index
    %c0_20 = arith.constant 0 : index
    %c0_21 = arith.constant 0 : index
    %29 = vector.load %arg3[%c2, %c0_20, %c0_21] : memref<4x64x32xf32, #tpu.memory_space<vmem>>, vector<1x64x32xf32>
    %30 = vector.shape_cast %29 : vector<1x64x32xf32> to vector<64x32xf32>
    %31 = vector.extract_strided_slice %30 {offsets = [0, 0], sizes = [32, 32], strides = [1, 1]} : vector<64x32xf32> to vector<32x32xf32>
    %32 = vector.extract_strided_slice %30 {offsets = [32, 0], sizes = [32, 32], strides = [1, 1]} : vector<64x32xf32> to vector<32x32xf32>
    %c2_22 = arith.constant 2 : index
    %c0_23 = arith.constant 0 : index
    %33 = vector.load %arg4[%c2_22, %c0_23] : memref<4x32xf32, #tpu.memory_space<vmem>>, vector<1x32xf32>
    %cst_24 = arith.constant dense<0.000000e+00> : vector<32x32xf32>
    %34 = tpu.matmul %28, %31, %cst_24 {dimension_numbers = #tpu.dot_dimension_numbers<[1], [0], [0], [1], [0, 0, 1, 1], [], []>} : vector<32x32xf32>, vector<32x32xf32>, vector<32x32xf32> -> vector<32x32xf32>
    %cst_25 = arith.constant dense<0.000000e+00> : vector<32x32xf32>
    %35 = tpu.matmul %27, %32, %cst_25 {dimension_numbers = #tpu.dot_dimension_numbers<[1], [0], [0], [1], [0, 0, 1, 1], [], []>} : vector<32x32xf32>, vector<32x32xf32>, vector<32x32xf32> -> vector<32x32xf32>
    %36 = arith.addf %34, %35 : vector<32x32xf32>
    %37 = vector.broadcast %33 : vector<1x32xf32> to vector<32x32xf32>
    %38 = arith.addf %36, %37 : vector<32x32xf32>
    %cst_26 = arith.constant 0.000000e+00 : f32
    %39 = vector.broadcast %cst_26 : f32 to vector<32x32xf32>
    %40 = arith.maximumf %38, %39 : vector<32x32xf32>
    %cst_27 = arith.constant dense<0.000000e+00> : vector<32x32xf32>
    %41 = tpu.matmul %0, %40, %cst_27 {dimension_numbers = #tpu.dot_dimension_numbers<[1], [0], [0], [1], [0, 0, 1, 1], [], []>} : vector<32x32xf32>, vector<32x32xf32>, vector<32x32xf32> -> vector<32x32xf32>
    %c3 = arith.constant 3 : index
    %c0_28 = arith.constant 0 : index
    %c0_29 = arith.constant 0 : index
    %42 = vector.load %arg3[%c3, %c0_28, %c0_29] : memref<4x64x32xf32, #tpu.memory_space<vmem>>, vector<1x64x32xf32>
    %43 = vector.shape_cast %42 : vector<1x64x32xf32> to vector<64x32xf32>
    %44 = vector.extract_strided_slice %43 {offsets = [0, 0], sizes = [32, 32], strides = [1, 1]} : vector<64x32xf32> to vector<32x32xf32>
    %45 = vector.extract_strided_slice %43 {offsets = [32, 0], sizes = [32, 32], strides = [1, 1]} : vector<64x32xf32> to vector<32x32xf32>
    %c3_30 = arith.constant 3 : index
    %c0_31 = arith.constant 0 : index
    %46 = vector.load %arg4[%c3_30, %c0_31] : memref<4x32xf32, #tpu.memory_space<vmem>>, vector<1x32xf32>
    %cst_32 = arith.constant dense<0.000000e+00> : vector<32x32xf32>
    %47 = tpu.matmul %41, %44, %cst_32 {dimension_numbers = #tpu.dot_dimension_numbers<[1], [0], [0], [1], [0, 0, 1, 1], [], []>} : vector<32x32xf32>, vector<32x32xf32>, vector<32x32xf32> -> vector<32x32xf32>
    %cst_33 = arith.constant dense<0.000000e+00> : vector<32x32xf32>
    %48 = tpu.matmul %40, %45, %cst_33 {dimension_numbers = #tpu.dot_dimension_numbers<[1], [0], [0], [1], [0, 0, 1, 1], [], []>} : vector<32x32xf32>, vector<32x32xf32>, vector<32x32xf32> -> vector<32x32xf32>
    %49 = arith.addf %47, %48 : vector<32x32xf32>
    %50 = vector.broadcast %46 : vector<1x32xf32> to vector<32x32xf32>
    %51 = arith.addf %49, %50 : vector<32x32xf32>
    %cst_34 = arith.constant 0.000000e+00 : f32
    %52 = vector.broadcast %cst_34 : f32 to vector<32x32xf32>
    %53 = arith.maximumf %51, %52 : vector<32x32xf32>
    %c0_35 = arith.constant 0 : index
    %c0_36 = arith.constant 0 : index
    %54 = vector.load %arg2[%c0_35, %c0_36] : memref<32x2xf32, #tpu.memory_space<vmem>>, vector<32x1xf32>
    %55 = vector.broadcast %54 : vector<32x1xf32> to vector<32x32xf32>
    %56 = arith.addf %53, %55 : vector<32x32xf32>
    %cst_37 = arith.constant dense<0xFF800000> : vector<32xf32>
    %57 = vector.multi_reduction <maximumf>, %56, %cst_37 [0] : vector<32x32xf32> to vector<32xf32>
    %58 = vector.shape_cast %57 : vector<32xf32> to vector<1x32xf32>
    %c0_38 = arith.constant 0 : index
    %c1_39 = arith.constant 1 : index
    %59 = vector.load %arg2[%c0_38, %c1_39] : memref<32x2xf32, #tpu.memory_space<vmem>>, vector<32x1xf32>
    %60 = vector.broadcast %59 : vector<32x1xf32> to vector<32x32xf32>
    %61 = arith.addf %53, %60 : vector<32x32xf32>
    %cst_40 = arith.constant dense<0xFF800000> : vector<32xf32>
    %62 = vector.multi_reduction <maximumf>, %61, %cst_40 [0] : vector<32x32xf32> to vector<32xf32>
    %63 = vector.shape_cast %62 : vector<32xf32> to vector<1x32xf32>
    %64 = tpu.concatenate %58, %63 in 0 : vector<1x32xf32>, vector<1x32xf32> -> vector<2x32xf32>
    %c0_41 = arith.constant 0 : index
    %c0_42 = arith.constant 0 : index
    %65 = vector.load %arg5[%c0_41, %c0_42] : memref<33x16xf32, #tpu.memory_space<vmem>>, vector<32x16xf32>
    %c32 = arith.constant 32 : index
    %c0_43 = arith.constant 0 : index
    %66 = vector.load %arg5[%c32, %c0_43] : memref<33x16xf32, #tpu.memory_space<vmem>>, vector<1x16xf32>
    %cst_44 = arith.constant dense<0.000000e+00> : vector<2x16xf32>
    %67 = tpu.matmul %64, %65, %cst_44 {dimension_numbers = #tpu.dot_dimension_numbers<[1], [0], [0], [1], [0, 0, 1, 1], [], []>} : vector<2x32xf32>, vector<32x16xf32>, vector<2x16xf32> -> vector<2x16xf32>
    %68 = vector.broadcast %66 : vector<1x16xf32> to vector<2x16xf32>
    %69 = arith.addf %67, %68 : vector<2x16xf32>
    %cst_45 = arith.constant 0.000000e+00 : f32
    %70 = vector.broadcast %cst_45 : f32 to vector<2x16xf32>
    %71 = arith.maximumf %69, %70 : vector<2x16xf32>
    %c0_46 = arith.constant 0 : index
    %c0_47 = arith.constant 0 : index
    %72 = vector.load %arg6[%c0_46, %c0_47] : memref<1x32xf32, #tpu.memory_space<vmem>>, vector<1x16xf32>
    %c0_48 = arith.constant 0 : index
    %c16 = arith.constant 16 : index
    %73 = vector.load %arg6[%c0_48, %c16] : memref<1x32xf32, #tpu.memory_space<vmem>>, vector<1x1xf32>
    %74 = vector.broadcast %72 : vector<1x16xf32> to vector<2x16xf32>
    %75 = arith.mulf %71, %74 : vector<2x16xf32>
    %cst_49 = arith.constant dense<0.000000e+00> : vector<2xf32>
    %76 = vector.multi_reduction <add>, %75, %cst_49 [1] : vector<2x16xf32> to vector<2xf32>
    %77 = vector.shape_cast %76 : vector<2xf32> to vector<2x1xf32>
    %78 = vector.broadcast %73 : vector<1x1xf32> to vector<2x1xf32>
    %79 = arith.addf %77, %78 : vector<2x1xf32>
    %cst_50 = arith.constant 0.000000e+00 : f32
    %80 = vector.broadcast %cst_50 : f32 to vector<2x1xf32>
    %81 = arith.subf %80, %79 : vector<2x1xf32>
    %82 = math.exp %81 : vector<2x1xf32>
    %cst_51 = arith.constant 1.000000e+00 : f32
    %83 = vector.broadcast %cst_51 : f32 to vector<2x1xf32>
    %84 = arith.addf %83, %82 : vector<2x1xf32>
    %cst_52 = arith.constant 1.000000e+00 : f32
    %85 = vector.broadcast %cst_52 : f32 to vector<2x1xf32>
    %86 = arith.divf %85, %84 : vector<2x1xf32>
    %c0_53 = arith.constant 0 : index
    %c0_54 = arith.constant 0 : index
    %87 = vector.load %arg7[%c0_53, %c0_54] : memref<2x1xf32, #tpu.memory_space<vmem>>, vector<2x1xf32>
    tpu.vector_store %arg7[%c0_53, %c0_54], %86 {strides = array<i32>} : memref<2x1xf32, #tpu.memory_space<vmem>>, vector<2x1xf32>,
    return
  }
}

</mosaic_0001>

<llo_original>
// kernel: tpu_custom_call.1
$region0: #{tpu_custom_call.1}
  #allocation0 [shape = 'u32[]', space=smem, size = 0x4, offset = 0x4, fixed_abs, tag = 'smem constant byte address 0x4 - core index']
  #allocation1 [shape = 'u32[144,128]{1,0:T(1,128)}', space=vmem, size = 0x12000, scoped, tag = 'internal scratch']
  %s0 = inlined_call_operand.vmem [shape: f32[32,32], index: 0, kind: input, shape index: {}]
  %s1 = inlined_call_operand.vmem [shape: f32[32,32], index: 1, kind: input, shape index: {}]
  %s2 = inlined_call_operand.vmem [shape: f32[32,2], index: 2, kind: input, shape index: {}]
  %s3 = inlined_call_operand.vmem [shape: f32[4,64,32], index: 3, kind: input, shape index: {}]
  %s4 = inlined_call_operand.vmem [shape: f32[4,32], index: 4, kind: input, shape index: {}]
  %s5 = inlined_call_operand.vmem [shape: f32[33,16], index: 5, kind: input, shape index: {}]
  %s6 = inlined_call_operand.vmem [shape: f32[1,32], index: 6, kind: input, shape index: {}]
  %s7 = inlined_call_operand.vmem [shape: f32[2,1], index: 7, kind: output, shape index: {}]
  %s8 = sld [smem:[#allocation0]]
  $region38: #{tpu_custom_call.1} parent=0
    _
  %s10 = ssub.s32 1, %s8
  %s11 = scalar_select 0, %s10, %s8
  // Predicated region
  $region2: #{tpu_custom_call.1} parent=0 // pred_check
    _
  $region3: #{tpu_custom_call.1} parent=0 // pred_check_branch
    %13 = sbr.rel (0) target = $region5
  $region4: #{tpu_custom_call.1} parent=0 // pred_region
    _
  $region5: #{tpu_custom_call.1} parent=0 // pred_fallthru
    _
  // Predicated region
  $region6: #{tpu_custom_call.1} parent=0 // pred_check
    _
  $region7: #{tpu_custom_call.1} parent=0 // pred_check_branch
    %15 = sbr.rel (0) target = $region9
  $region8: #{tpu_custom_call.1} parent=0 // pred_region
    _
  $region9: #{tpu_custom_call.1} parent=0 // pred_fallthru
    _
  // Predicated region
  $region10: #{tpu_custom_call.1} parent=0 // pred_check
    _
  $region11: #{tpu_custom_call.1} parent=0 // pred_check_branch
    %17 = sbr.rel (0) target = $region13
  $region12: #{tpu_custom_call.1} parent=0 // pred_region
    _
  $region13: #{tpu_custom_call.1} parent=0 // pred_fallthru
    _
  // Predicated region
  $region14: #{tpu_custom_call.1} parent=0 // pred_check
    _
  $region15: #{tpu_custom_call.1} parent=0 // pred_check_branch
    %19 = sbr.rel (0) target = $region17
  $region16: #{tpu_custom_call.1} parent=0 // pred_region
    _
  $region17: #{tpu_custom_call.1} parent=0 // pred_fallthru
    _
  // Predicated region
  $region18: #{tpu_custom_call.1} parent=0 // pred_check
    _
  $region19: #{tpu_custom_call.1} parent=0 // pred_check_branch
    %21 = sbr.rel (0) target = $region21
  $region20: #{tpu_custom_call.1} parent=0 // pred_region
    _
  $region21: #{tpu_custom_call.1} parent=0 // pred_fallthru
    _
  // Predicated region
  $region22: #{tpu_custom_call.1} parent=0 // pred_check
    _
  $region23: #{tpu_custom_call.1} parent=0 // pred_check_branch
    %23 = sbr.rel (0) target = $region25
  $region24: #{tpu_custom_call.1} parent=0 // pred_region
    _
  $region25: #{tpu_custom_call.1} parent=0 // pred_fallthru
    _
  // Predicated region
  $region26: #{tpu_custom_call.1} parent=0 // pred_check
    _
  $region27: #{tpu_custom_call.1} parent=0 // pred_check_branch
    %25 = sbr.rel (0) target = $region29
  $region28: #{tpu_custom_call.1} parent=0 // pred_region
    _
  $region29: #{tpu_custom_call.1} parent=0 // pred_fallthru
    _
  %v26 = vld [vmem:[%s1] sm:$0xff]
  %v27 = vld [vmem:[%s1 + $0x8] sm:$0xff]
  %v28 = vld [vmem:[%s1 + $0x10] sm:$0xff]
  %v29 = vld [vmem:[%s1 + $0x18] sm:$0xff]
  %v30 = vld [vmem:[%s0] sm:$0xff]
  %v31 = vld [vmem:[%s0 + $0x8] sm:$0xff]
  %v32 = vld [vmem:[%s0 + $0x10] sm:$0xff]
  %v33 = vld [vmem:[%s0 + $0x18] sm:$0xff]
  %vm34 = vcmask 261120
  %v36 = vsel %vm34, %v26, 0
  %v39 = vsel %vm34, %v27, 0
  %v42 = vsel %vm34, %v28, 0
  %v45 = vsel %vm34, %v29, 0
  %47 = vmatprep.subr.mxu0 0.0
  %48 = vmatpush1.msra.mxu0 %v30
  %49 = vmatprep.subr.mxu0 0.0
  %50 = vmatpush1.msra.mxu0 %v31
  %51 = vmatprep.subr.mxu0 0.0
  %52 = vmatpush1.msra.mxu0 %v32
  %53 = vmatprep.subr.mxu0 0.0
  %54 = vmatpush1.msra.mxu0 %v33
  %55 = vmatprep.subr.mxu0 0.0
  %56 = vmatpush1.msra.mxu0 0.0
  %57 = vmatprep.subr.mxu0 0.0
  %58 = vmatpush1.msra.mxu0 0.0
  %59 = vmatprep.subr.mxu0 0.0
  %60 = vmatpush1.msra.mxu0 0.0
  %61 = vmatprep.subr.mxu0 0.0
  %62 = vmatpush1.msra.mxu0 0.0
  %63 = vmatprep.subr.mxu0 0.0
  %64 = vmatpush1.msra.mxu0 0.0
  %65 = vmatprep.subr.mxu0 0.0
  %66 = vmatpush1.msra.mxu0 0.0
  %67 = vmatprep.subr.mxu0 0.0
  %68 = vmatpush1.msra.mxu0 0.0
  %69 = vmatprep.subr.mxu0 0.0
  %70 = vmatpush1.msra.mxu0 0.0
  %71 = vmatprep.subr.mxu0 0.0
  %72 = vmatpush1.msra.mxu0 0.0
  %73 = vmatprep.subr.mxu0 0.0
  %74 = vmatpush1.msra.mxu0 0.0
  %75 = vmatprep.subr.mxu0 0.0
  %76 = vmatpush1.msra.mxu0 0.0
  %77 = vmatprep.subr.mxu0 0.0
  %78 = vmatpush1.msra.mxu0 0.0
  %79 = vmatprep.subr.mxu0 0.0
  %80 = vmatpush1.msra.mxu0 0.0
  %81 = vmatprep.subr.mxu0 0.0
  %82 = vmatpush1.msra.mxu0 0.0
  %83 = vmatprep.subr.mxu0 0.0
  %84 = vmatpush1.msra.mxu0 0.0
  %85 = vmatprep.subr.mxu0 0.0
  %86 = vmatpush1.msra.mxu0 0.0
  %87 = vmatprep.subr.mxu0 0.0
  %88 = vmatpush1.msra.mxu0 0.0
  %89 = vmatprep.subr.mxu0 0.0
  %90 = vmatpush1.msra.mxu0 0.0
  %91 = vmatprep.subr.mxu0 0.0
  %92 = vmatpush1.msra.mxu0 0.0
  %93 = vmatprep.subr.mxu0 0.0
  %94 = vmatpush1.msra.mxu0 0.0
  %95 = vmatprep.subr.mxu0 0.0
  %96 = vmatpush1.msra.mxu0 0.0
  %97 = vmatprep.subr.mxu0 0.0
  %98 = vmatpush1.msra.mxu0 0.0
  %99 = vmatprep.subr.mxu0 0.0
  %100 = vmatpush1.msra.mxu0 0.0
  %101 = vmatprep.subr.mxu0 0.0
  %102 = vmatpush1.msra.mxu0 0.0
  %103 = vmatprep.subr.mxu0 0.0
  %104 = vmatpush1.msra.mxu0 0.0
  %105 = vmatprep.subr.mxu0 0.0
  %106 = vmatpush1.msra.mxu0 0.0
  %107 = vmatprep.subr.mxu0 0.0
  %108 = vmatpush1.msra.mxu0 0.0
  %109 = vmatprep.subr.mxu0 0.0
  %110 = vmatpush1.msra.mxu0 0.0
  %111 = vmatprep.mubr.f32.mxu0 0.0
  %112 = vmatmul.mubr.f32.gmra.mrb[0].mxu0 %v36
  %v113 = vpop.f32.mrb[0].mxu0
  %v114 = vadd.f32 0.0, %v113
  %v115 = vpop.f32.mrb[0].mxu0
  %116 = vmatprep.mubr.f32.mxu0 0.0
  %117 = vmatmul.mubr.f32.gmra.mrb[0].mxu0 %v39
  %v118 = vpop.f32.mrb[0].mxu0
  %v119 = vadd.f32 0.0, %v118
  %v120 = vpop.f32.mrb[0].mxu0
  %121 = vmatprep.mubr.f32.mxu0 0.0
  %122 = vmatmul.mubr.f32.gmra.mrb[0].mxu0 %v42
  %v123 = vpop.f32.mrb[0].mxu0
  %v124 = vadd.f32 0.0, %v123
  %v125 = vpop.f32.mrb[0].mxu0
  %126 = vmatprep.mubr.f32.mxu0 0.0
  %127 = vmatmul.mubr.f32.gmra.mrb[0].mxu0 %v45
  %v128 = vpop.f32.mrb[0].mxu0
  %v129 = vadd.f32 0.0, %v128
  %v130 = vpop.f32.mrb[0].mxu0
  %131 = vdwg.mxu0
  %v132 = vld [vmem:[%s3] sm:$0xff]
  %v133 = vld [vmem:[%s3 + $0x8] sm:$0xff]
  %v134 = vld [vmem:[%s3 + $0x10] sm:$0xff]
  %v135 = vld [vmem:[%s3 + $0x18] sm:$0xff]
  %v136 = vld [vmem:[%s3 + $0x20] sm:$0xff]
  %v137 = vld [vmem:[%s3 + $0x28] sm:$0xff]
  %v138 = vld [vmem:[%s3 + $0x30] sm:$0xff]
  %v139 = vld [vmem:[%s3 + $0x38] sm:$0xff]
  %v140 = vld [vmem:[%s4] sm:$0x1]
  %v142 = vsel %vm34, %v30, 0
  %v145 = vsel %vm34, %v31, 0
  %v148 = vsel %vm34, %v32, 0
  %v151 = vsel %vm34, %v33, 0
  %153 = vmatprep.subr.mxu0 0.0
  %154 = vmatpush1.msra.mxu0 %v136
  %155 = vmatprep.subr.mxu0 0.0
  %156 = vmatpush1.msra.mxu0 %v137
  %157 = vmatprep.subr.mxu0 0.0
  %158 = vmatpush1.msra.mxu0 %v138
  %159 = vmatprep.subr.mxu0 0.0
  %160 = vmatpush1.msra.mxu0 %v139
  %161 = vmatprep.subr.mxu0 0.0
  %162 = vmatpush1.msra.mxu0 0.0
  %163 = vmatprep.subr.mxu0 0.0
  %164 = vmatpush1.msra.mxu0 0.0
  %165 = vmatprep.subr.mxu0 0.0
  %166 = vmatpush1.msra.mxu0 0.0
  %167 = vmatprep.subr.mxu0 0.0
  %168 = vmatpush1.msra.mxu0 0.0
  %169 = vmatprep.subr.mxu0 0.0
  %170 = vmatpush1.msra.mxu0 0.0
  %171 = vmatprep.subr.mxu0 0.0
  %172 = vmatpush1.msra.mxu0 0.0
  %173 = vmatprep.subr.mxu0 0.0
  %174 = vmatpush1.msra.mxu0 0.0
  %175 = vmatprep.subr.mxu0 0.0
  %176 = vmatpush1.msra.mxu0 0.0
  %177 = vmatprep.subr.mxu0 0.0
  %178 = vmatpush1.msra.mxu0 0.0
  %179 = vmatprep.subr.mxu0 0.0
  %180 = vmatpush1.msra.mxu0 0.0
  %181 = vmatprep.subr.mxu0 0.0
  %182 = vmatpush1.msra.mxu0 0.0
  %183 = vmatprep.subr.mxu0 0.0
  %184 = vmatpush1.msra.mxu0 0.0
  %185 = vmatprep.subr.mxu0 0.0
  %186 = vmatpush1.msra.mxu0 0.0
  %187 = vmatprep.subr.mxu0 0.0
  %188 = vmatpush1.msra.mxu0 0.0
  %189 = vmatprep.subr.mxu0 0.0
  %190 = vmatpush1.msra.mxu0 0.0
  %191 = vmatprep.subr.mxu0 0.0
  %192 = vmatpush1.msra.mxu0 0.0
  %193 = vmatprep.subr.mxu0 0.0
  %194 = vmatpush1.msra.mxu0 0.0
  %195 = vmatprep.subr.mxu0 0.0
  %196 = vmatpush1.msra.mxu0 0.0
  %197 = vmatprep.subr.mxu0 0.0
  %198 = vmatpush1.msra.mxu0 0.0
  %199 = vmatprep.subr.mxu0 0.0
  %200 = vmatpush1.msra.mxu0 0.0
  %201 = vmatprep.subr.mxu0 0.0
  %202 = vmatpush1.msra.mxu0 0.0
  %203 = vmatprep.subr.mxu0 0.0
  %204 = vmatpush1.msra.mxu0 0.0
  %205 = vmatprep.subr.mxu0 0.0
  %206 = vmatpush1.msra.mxu0 0.0
  %207 = vmatprep.subr.mxu0 0.0
  %208 = vmatpush1.msra.mxu0 0.0
  %209 = vmatprep.subr.mxu0 0.0
  %210 = vmatpush1.msra.mxu0 0.0
  %211 = vmatprep.subr.mxu0 0.0
  %212 = vmatpush1.msra.mxu0 0.0
  %213 = vmatprep.subr.mxu0 0.0
  %214 = vmatpush1.msra.mxu0 0.0
  %215 = vmatprep.subr.mxu0 0.0
  %216 = vmatpush1.msra.mxu0 0.0
  %217 = vmatprep.mubr.f32.mxu0 0.0
  %218 = vmatmul.mubr.f32.gmra.mrb[0].mxu0 %v142
  %v219 = vpop.f32.mrb[0].mxu0
  %v220 = vadd.f32 0.0, %v219
  %v221 = vpop.f32.mrb[0].mxu0
  %222 = vmatprep.mubr.f32.mxu0 0.0
  %223 = vmatmul.mubr.f32.gmra.mrb[0].mxu0 %v145
  %v224 = vpop.f32.mrb[0].mxu0
  %v225 = vadd.f32 0.0, %v224
  %v226 = vpop.f32.mrb[0].mxu0
  %227 = vmatprep.mubr.f32.mxu0 0.0
  %228 = vmatmul.mubr.f32.gmra.mrb[0].mxu0 %v148
  %v229 = vpop.f32.mrb[0].mxu0
  %v230 = vadd.f32 0.0, %v229
  %v231 = vpop.f32.mrb[0].mxu0
  %232 = vmatprep.mubr.f32.mxu0 0.0
  %233 = vmatmul.mubr.f32.gmra.mrb[0].mxu0 %v151
  %v234 = vpop.f32.mrb[0].mxu0
  %v235 = vadd.f32 0.0, %v234
  %v236 = vpop.f32.mrb[0].mxu0
  %237 = vdwg.mxu0
  %v239 = vsel %vm34, %v114, 0
  %v242 = vsel %vm34, %v119, 0
  %v245 = vsel %vm34, %v124, 0
  %v248 = vsel %vm34, %v129, 0
  %250 = vmatprep.subr.mxu0 0.0
  %251 = vmatpush1.msra.mxu0 %v132
  %252 = vmatprep.subr.mxu0 0.0
  %253 = vmatpush1.msra.mxu0 %v133
  %254 = vmatprep.subr.mxu0 0.0
  %255 = vmatpush1.msra.mxu0 %v134
  %256 = vmatprep.subr.mxu0 0.0
  %257 = vmatpush1.msra.mxu0 %v135
  %258 = vmatprep.subr.mxu0 0.0
  %259 = vmatpush1.msra.mxu0 0.0
  %260 = vmatprep.subr.mxu0 0.0
  %261 = vmatpush1.msra.mxu0 0.0
  %262 = vmatprep.subr.mxu0 0.0
  %263 = vmatpush1.msra.mxu0 0.0
  %264 = vmatprep.subr.mxu0 0.0
  %265 = vmatpush1.msra.mxu0 0.0
  %266 = vmatprep.subr.mxu0 0.0
  %267 = vmatpush1.msra.mxu0 0.0
  %268 = vmatprep.subr.mxu0 0.0
  %269 = vmatpush1.msra.mxu0 0.0
  %270 = vmatprep.subr.mxu0 0.0
  %271 = vmatpush1.msra.mxu0 0.0
  %272 = vmatprep.subr.mxu0 0.0
  %273 = vmatpush1.msra.mxu0 0.0
  %274 = vmatprep.subr.mxu0 0.0
  %275 = vmatpush1.msra.mxu0 0.0
  %276 = vmatprep.subr.mxu0 0.0
  %277 = vmatpush1.msra.mxu0 0.0
  %278 = vmatprep.subr.mxu0 0.0
  %279 = vmatpush1.msra.mxu0 0.0
  %280 = vmatprep.subr.mxu0 0.0
  %281 = vmatpush1.msra.mxu0 0.0
  %282 = vmatprep.subr.mxu0 0.0
  %283 = vmatpush1.msra.mxu0 0.0
  %284 = vmatprep.subr.mxu0 0.0
  %285 = vmatpush1.msra.mxu0 0.0
  %286 = vmatprep.subr.mxu0 0.0
  %287 = vmatpush1.msra.mxu0 0.0
  %288 = vmatprep.subr.mxu0 0.0
  %289 = vmatpush1.msra.mxu0 0.0
  %290 = vmatprep.subr.mxu0 0.0
  %291 = vmatpush1.msra.mxu0 0.0
  %292 = vmatprep.subr.mxu0 0.0
  %293 = vmatpush1.msra.mxu0 0.0
  %294 = vmatprep.subr.mxu0 0.0
  %295 = vmatpush1.msra.mxu0 0.0
  %296 = vmatprep.subr.mxu0 0.0
  %297 = vmatpush1.msra.mxu0 0.0
  %298 = vmatprep.subr.mxu0 0.0
  %299 = vmatpush1.msra.mxu0 0.0
  %300 = vmatprep.subr.mxu0 0.0
  %301 = vmatpush1.msra.mxu0 0.0
  %302 = vmatprep.subr.mxu0 0.0
  %303 = vmatpush1.msra.mxu0 0.0
  %304 = vmatprep.subr.mxu0 0.0
  %305 = vmatpush1.msra.mxu0 0.0
  %306 = vmatprep.subr.mxu0 0.0
  %307 = vmatpush1.msra.mxu0 0.0
  %308 = vmatprep.subr.mxu0 0.0
  %309 = vmatpush1.msra.mxu0 0.0
  %310 = vmatprep.subr.mxu0 0.0
  %311 = vmatpush1.msra.mxu0 0.0
  %312 = vmatprep.subr.mxu0 0.0
  %313 = vmatpush1.msra.mxu0 0.0
  %314 = vmatprep.mubr.f32.mxu0 0.0
  %315 = vmatmul.mubr.f32.gmra.mrb[0].mxu0 %v239
  %v316 = vpop.f32.mrb[0].mxu0
  %v317 = vadd.f32 %v220, %v316
  %v318 = vpop.f32.mrb[0].mxu0
  %319 = vmatprep.mubr.f32.mxu0 0.0
  %320 = vmatmul.mubr.f32.gmra.mrb[0].mxu0 %v242
  %v321 = vpop.f32.mrb[0].mxu0
  %v322 = vadd.f32 %v225, %v321
  %v323 = vpop.f32.mrb[0].mxu0
  %324 = vmatprep.mubr.f32.mxu0 0.0
  %325 = vmatmul.mubr.f32.gmra.mrb[0].mxu0 %v245
  %v326 = vpop.f32.mrb[0].mxu0
  %v327 = vadd.f32 %v230, %v326
  %v328 = vpop.f32.mrb[0].mxu0
  %329 = vmatprep.mubr.f32.mxu0 0.0
  %330 = vmatmul.mubr.f32.gmra.mrb[0].mxu0 %v248
  %v331 = vpop.f32.mrb[0].mxu0
  %v332 = vadd.f32 %v235, %v331
  %v333 = vpop.f32.mrb[0].mxu0
  %334 = vdwg.mxu0
  %v335 = vlaneseq
  %v336 = vshrl.u32 %v335, 7
  %v337 = vsub.s32 0, %v336
  %v338 = vrot.slane %v140, %v337
  %v339 = vadd.f32 %v317, %v338
  %v340 = vadd.f32 %v322, %v338
  %v341 = vadd.f32 %v327, %v338
  %v342 = vadd.f32 %v332, %v338
  %v343 = vmax.f32 %v339, 0.0
  %v344 = vmax.f32 %v340, 0.0
  %v345 = vmax.f32 %v341, 0.0
  %v346 = vmax.f32 %v342, 0.0
  %347 = vmatprep.subr.mxu0 0.0
  %348 = vmatpush1.msra.mxu0 %v343
  %349 = vmatprep.subr.mxu0 0.0
  %350 = vmatpush1.msra.mxu0 %v344
  %351 = vmatprep.subr.mxu0 0.0
  %352 = vmatpush1.msra.mxu0 %v345
  %353 = vmatprep.subr.mxu0 0.0
  %354 = vmatpush1.msra.mxu0 %v346
  %355 = vmatprep.subr.mxu0 0.0
  %356 = vmatpush1.msra.mxu0 0.0
  %357 = vmatprep.subr.mxu0 0.0
  %358 = vmatpush1.msra.mxu0 0.0
  %359 = vmatprep.subr.mxu0 0.0
  %360 = vmatpush1.msra.mxu0 0.0
  %361 = vmatprep.subr.mxu0 0.0
  %362 = vmatpush1.msra.mxu0 0.0
  %363 = vmatprep.subr.mxu0 0.0
  %364 = vmatpush1.msra.mxu0 0.0
  %365 = vmatprep.subr.mxu0 0.0
  %366 = vmatpush1.msra.mxu0 0.0
  %367 = vmatprep.subr.mxu0 0.0
  %368 = vmatpush1.msra.mxu0 0.0
  %369 = vmatprep.subr.mxu0 0.0
  %370 = vmatpush1.msra.mxu0 0.0
  %371 = vmatprep.subr.mxu0 0.0
  %372 = vmatpush1.msra.mxu0 0.0
  %373 = vmatprep.subr.mxu0 0.0
  %374 = vmatpush1.msra.mxu0 0.0
  %375 = vmatprep.subr.mxu0 0.0
  %376 = vmatpush1.msra.mxu0 0.0
  %377 = vmatprep.subr.mxu0 0.0
  %378 = vmatpush1.msra.mxu0 0.0
  %379 = vmatprep.subr.mxu0 0.0
  %380 = vmatpush1.msra.mxu0 0.0
  %381 = vmatprep.subr.mxu0 0.0
  %382 = vmatpush1.msra.mxu0 0.0
  %383 = vmatprep.subr.mxu0 0.0
  %384 = vmatpush1.msra.mxu0 0.0
  %385 = vmatprep.subr.mxu0 0.0
  %386 = vmatpush1.msra.mxu0 0.0
  %387 = vmatprep.subr.mxu0 0.0
  %388 = vmatpush1.msra.mxu0 0.0
  %389 = vmatprep.subr.mxu0 0.0
  %390 = vmatpush1.msra.mxu0 0.0
  %391 = vmatprep.subr.mxu0 0.0
  %392 = vmatpush1.msra.mxu0 0.0
  %393 = vmatprep.subr.mxu0 0.0
  %394 = vmatpush1.msra.mxu0 0.0
  %395 = vmatprep.subr.mxu0 0.0
  %396 = vmatpush1.msra.mxu0 0.0
  %397 = vmatprep.subr.mxu0 0.0
  %398 = vmatpush1.msra.mxu0 0.0
  %399 = vmatprep.subr.mxu0 0.0
  %400 = vmatpush1.msra.mxu0 0.0
  %401 = vmatprep.subr.mxu0 0.0
  %402 = vmatpush1.msra.mxu0 0.0
  %403 = vmatprep.subr.mxu0 0.0
  %404 = vmatpush1.msra.mxu0 0.0
  %405 = vmatprep.subr.mxu0 0.0
  %406 = vmatpush1.msra.mxu0 0.0
  %407 = vmatprep.subr.mxu0 0.0
  %408 = vmatpush1.msra.mxu0 0.0
  %409 = vmatprep.subr.mxu0 0.0
  %410 = vmatpush1.msra.mxu0 0.0
  %411 = vmatprep.mubr.f32.mxu0 0.0
  %412 = vmatmul.mubr.f32.gmra.mrb[0].mxu0 %v36
  %v413 = vpop.f32.mrb[0].mxu0
  %v414 = vadd.f32 0.0, %v413
  %v415 = vpop.f32.mrb[0].mxu0
  %416 = vmatprep.mubr.f32.mxu0 0.0
  %417 = vmatmul.mubr.f32.gmra.mrb[0].mxu0 %v39
  %v418 = vpop.f32.mrb[0].mxu0
  %v419 = vadd.f32 0.0, %v418
  %v420 = vpop.f32.mrb[0].mxu0
  %421 = vmatprep.mubr.f32.mxu0 0.0
  %422 = vmatmul.mubr.f32.gmra.mrb[0].mxu0 %v42
  %v423 = vpop.f32.mrb[0].mxu0
  %v424 = vadd.f32 0.0, %v423
  %v425 = vpop.f32.mrb[0].mxu0
  %426 = vmatprep.mubr.f32.mxu0 0.0
  %427 = vmatmul.mubr.f32.gmra.mrb[0].mxu0 %v45
  %v428 = vpop.f32.mrb[0].mxu0
  %v429 = vadd.f32 0.0, %v428
  %v430 = vpop.f32.mrb[0].mxu0
  %431 = vdwg.mxu0
  %s432 = scalar_lea.vmem %s3, 64
  %v433 = vld [vmem:[%s432] sm:$0xff]
  %v434 = vld [vmem:[%s432 + $0x8] sm:$0xff]
  %v435 = vld [vmem:[%s432 + $0x10] sm:$0xff]
  %v436 = vld [vmem:[%s432 + $0x18] sm:$0xff]
  %v437 = vld [vmem:[%s432 + $0x20] sm:$0xff]
  %v438 = vld [vmem:[%s432 + $0x28] sm:$0xff]
  %v439 = vld [vmem:[%s432 + $0x30] sm:$0xff]
  %v440 = vld [vmem:[%s432 + $0x38] sm:$0xff]
  %v441 = vld [vmem:[%s4 + $0x1] sm:$0x1]
  %v443 = vsel %vm34, %v343, 0
  %v446 = vsel %vm34, %v344, 0
  %v449 = vsel %vm34, %v345, 0
  %v452 = vsel %vm34, %v346, 0
  %454 = vmatprep.subr.mxu0 0.0
  %455 = vmatpush1.msra.mxu0 %v437
  %456 = vmatprep.subr.mxu0 0.0
  %457 = vmatpush1.msra.mxu0 %v438
  %458 = vmatprep.subr.mxu0 0.0
  %459 = vmatpush1.msra.mxu0 %v439
  %460 = vmatprep.subr.mxu0 0.0
  %461 = vmatpush1.msra.mxu0 %v440
  %462 = vmatprep.subr.mxu0 0.0
  %463 = vmatpush1.msra.mxu0 0.0
  %464 = vmatprep.subr.mxu0 0.0
  %465 = vmatpush1.msra.mxu0 0.0
  %466 = vmatprep.subr.mxu0 0.0
  %467 = vmatpush1.msra.mxu0 0.0
  %468 = vmatprep.subr.mxu0 0.0
  %469 = vmatpush1.msra.mxu0 0.0
  %470 = vmatprep.subr.mxu0 0.0
  %471 = vmatpush1.msra.mxu0 0.0
  %472 = vmatprep.subr.mxu0 0.0
  %473 = vmatpush1.msra.mxu0 0.0
  %474 = vmatprep.subr.mxu0 0.0
  %475 = vmatpush1.msra.mxu0 0.0
  %476 = vmatprep.subr.mxu0 0.0
  %477 = vmatpush1.msra.mxu0 0.0
  %478 = vmatprep.subr.mxu0 0.0
  %479 = vmatpush1.msra.mxu0 0.0
  %480 = vmatprep.subr.mxu0 0.0
  %481 = vmatpush1.msra.mxu0 0.0
  %482 = vmatprep.subr.mxu0 0.0
  %483 = vmatpush1.msra.mxu0 0.0
  %484 = vmatprep.subr.mxu0 0.0
  %485 = vmatpush1.msra.mxu0 0.0
  %486 = vmatprep.subr.mxu0 0.0
  %487 = vmatpush1.msra.mxu0 0.0
  %488 = vmatprep.subr.mxu0 0.0
  %489 = vmatpush1.msra.mxu0 0.0
  %490 = vmatprep.subr.mxu0 0.0
  %491 = vmatpush1.msra.mxu0 0.0
  %492 = vmatprep.subr.mxu0 0.0
  %493 = vmatpush1.msra.mxu0 0.0
  %494 = vmatprep.subr.mxu0 0.0
  %495 = vmatpush1.msra.mxu0 0.0
  %496 = vmatprep.subr.mxu0 0.0
  %497 = vmatpush1.msra.mxu0 0.0
  %498 = vmatprep.subr.mxu0 0.0
  %499 = vmatpush1.msra.mxu0 0.0
  %500 = vmatprep.subr.mxu0 0.0
  %501 = vmatpush1.msra.mxu0 0.0
  %502 = vmatprep.subr.mxu0 0.0
  %503 = vmatpush1.msra.mxu0 0.0
  %504 = vmatprep.subr.mxu0 0.0
  %505 = vmatpush1.msra.mxu0 0.0
  %506 = vmatprep.subr.mxu0 0.0
  %507 = vmatpush1.msra.mxu0 0.0
  %508 = vmatprep.subr.mxu0 0.0
  %509 = vmatpush1.msra.mxu0 0.0
  %510 = vmatprep.subr.mxu0 0.0
  %511 = vmatpush1.msra.mxu0 0.0
  %512 = vmatprep.subr.mxu0 0.0
  %513 = vmatpush1.msra.mxu0 0.0
  %514 = vmatprep.subr.mxu0 0.0
  %515 = vmatpush1.msra.mxu0 0.0
  %516 = vmatprep.subr.mxu0 0.0
  %517 = vmatpush1.msra.mxu0 0.0
  %518 = vmatprep.mubr.f32.mxu0 0.0
  %519 = vmatmul.mubr.f32.gmra.mrb[0].mxu0 %v443
  %v520 = vpop.f32.mrb[0].mxu0
  %v521 = vadd.f32 0.0, %v520
  %v522 = vpop.f32.mrb[0].mxu0
  %523 = vmatprep.mubr.f32.mxu0 0.0
  %524 = vmatmul.mubr.f32.gmra.mrb[0].mxu0 %v446
  %v525 = vpop.f32.mrb[0].mxu0
  %v526 = vadd.f32 0.0, %v525
  %v527 = vpop.f32.mrb[0].mxu0
  %528 = vmatprep.mubr.f32.mxu0 0.0
  %529 = vmatmul.mubr.f32.gmra.mrb[0].mxu0 %v449
  %v530 = vpop.f32.mrb[0].mxu0
  %v531 = vadd.f32 0.0, %v530
  %v532 = vpop.f32.mrb[0].mxu0
  %533 = vmatprep.mubr.f32.mxu0 0.0
  %534 = vmatmul.mubr.f32.gmra.mrb[0].mxu0 %v452
  %v535 = vpop.f32.mrb[0].mxu0
  %v536 = vadd.f32 0.0, %v535
  %v537 = vpop.f32.mrb[0].mxu0
  %538 = vdwg.mxu0
  %v540 = vsel %vm34, %v414, 0
  %v543 = vsel %vm34, %v419, 0
  %v546 = vsel %vm34, %v424, 0
  %v549 = vsel %vm34, %v429, 0
  %551 = vmatprep.subr.mxu0 0.0
  %552 = vmatpush1.msra.mxu0 %v433
  %553 = vmatprep.subr.mxu0 0.0
  %554 = vmatpush1.msra.mxu0 %v434
  %555 = vmatprep.subr.mxu0 0.0
  %556 = vmatpush1.msra.mxu0 %v435
  %557 = vmatprep.subr.mxu0 0.0
  %558 = vmatpush1.msra.mxu0 %v436
  %559 = vmatprep.subr.mxu0 0.0
  %560 = vmatpush1.msra.mxu0 0.0
  %561 = vmatprep.subr.mxu0 0.0
  %562 = vmatpush1.msra.mxu0 0.0
  %563 = vmatprep.subr.mxu0 0.0
  %564 = vmatpush1.msra.mxu0 0.0
  %565 = vmatprep.subr.mxu0 0.0
  %566 = vmatpush1.msra.mxu0 0.0
  %567 = vmatprep.subr.mxu0 0.0
  %568 = vmatpush1.msra.mxu0 0.0
  %569 = vmatprep.subr.mxu0 0.0
  %570 = vmatpush1.msra.mxu0 0.0
  %571 = vmatprep.subr.mxu0 0.0
  %572 = vmatpush1.msra.mxu0 0.0
  %573 = vmatprep.subr.mxu0 0.0
  %574 = vmatpush1.msra.mxu0 0.0
  %575 = vmatprep.subr.mxu0 0.0
  %576 = vmatpush1.msra.mxu0 0.0
  %577 = vmatprep.subr.mxu0 0.0
  %578 = vmatpush1.msra.mxu0 0.0
  %579 = vmatprep.subr.mxu0 0.0
  %580 = vmatpush1.msra.mxu0 0.0
  %581 = vmatprep.subr.mxu0 0.0
  %582 = vmatpush1.msra.mxu0 0.0
  %583 = vmatprep.subr.mxu0 0.0
  %584 = vmatpush1.msra.mxu0 0.0
  %585 = vmatprep.subr.mxu0 0.0
  %586 = vmatpush1.msra.mxu0 0.0
  %587 = vmatprep.subr.mxu0 0.0
  %588 = vmatpush1.msra.mxu0 0.0
  %589 = vmatprep.subr.mxu0 0.0
  %590 = vmatpush1.msra.mxu0 0.0
  %591 = vmatprep.subr.mxu0 0.0
  %592 = vmatpush1.msra.mxu0 0.0
  %593 = vmatprep.subr.mxu0 0.0
  %594 = vmatpush1.msra.mxu0 0.0
  %595 = vmatprep.subr.mxu0 0.0
  %596 = vmatpush1.msra.mxu0 0.0
  %597 = vmatprep.subr.mxu0 0.0
  %598 = vmatpush1.msra.mxu0 0.0
  %599 = vmatprep.subr.mxu0 0.0
  %600 = vmatpush1.msra.mxu0 0.0
  %601 = vmatprep.subr.mxu0 0.0
  %602 = vmatpush1.msra.mxu0 0.0
  %603 = vmatprep.subr.mxu0 0.0
  %604 = vmatpush1.msra.mxu0 0.0
  %605 = vmatprep.subr.mxu0 0.0
  %606 = vmatpush1.msra.mxu0 0.0
  %607 = vmatprep.subr.mxu0 0.0
  %608 = vmatpush1.msra.mxu0 0.0
  %609 = vmatprep.subr.mxu0 0.0
  %610 = vmatpush1.msra.mxu0 0.0
  %611 = vmatprep.subr.mxu0 0.0
  %612 = vmatpush1.msra.mxu0 0.0
  %613 = vmatprep.subr.mxu0 0.0
  %614 = vmatpush1.msra.mxu0 0.0
  %615 = vmatprep.mubr.f32.mxu0 0.0
  %616 = vmatmul.mubr.f32.gmra.mrb[0].mxu0 %v540
  %v617 = vpop.f32.mrb[0].mxu0
  %v618 = vadd.f32 %v521, %v617
  %v619 = vpop.f32.mrb[0].mxu0
  %620 = vmatprep.mubr.f32.mxu0 0.0
  %621 = vmatmul.mubr.f32.gmra.mrb[0].mxu0 %v543
  %v622 = vpop.f32.mrb[0].mxu0
  %v623 = vadd.f32 %v526, %v622
  %v624 = vpop.f32.mrb[0].mxu0
  %625 = vmatprep.mubr.f32.mxu0 0.0
  %626 = vmatmul.mubr.f32.gmra.mrb[0].mxu0 %v546
  %v627 = vpop.f32.mrb[0].mxu0
  %v628 = vadd.f32 %v531, %v627
  %v629 = vpop.f32.mrb[0].mxu0
  %630 = vmatprep.mubr.f32.mxu0 0.0
  %631 = vmatmul.mubr.f32.gmra.mrb[0].mxu0 %v549
  %v632 = vpop.f32.mrb[0].mxu0
  %v633 = vadd.f32 %v536, %v632
  %v634 = vpop.f32.mrb[0].mxu0
  %635 = vdwg.mxu0
  %v636 = vlaneseq
  %v637 = vshrl.u32 %v636, 7
  %v638 = vsub.s32 0, %v637
  %v639 = vrot.slane %v441, %v638
  %v640 = vadd.f32 %v618, %v639
  %v641 = vadd.f32 %v623, %v639
  %v642 = vadd.f32 %v628, %v639
  %v643 = vadd.f32 %v633, %v639
  %v644 = vmax.f32 %v640, 0.0
  %v645 = vmax.f32 %v641, 0.0
  %v646 = vmax.f32 %v642, 0.0
  %v647 = vmax.f32 %v643, 0.0
  %648 = vmatprep.subr.mxu0 0.0
  %649 = vmatpush1.msra.mxu0 %v644
  %650 = vmatprep.subr.mxu0 0.0
  %651 = vmatpush1.msra.mxu0 %v645
  %652 = vmatprep.subr.mxu0 0.0
  %653 = vmatpush1.msra.mxu0 %v646
  %654 = vmatprep.subr.mxu0 0.0
  %655 = vmatpush1.msra.mxu0 %v647
  %656 = vmatprep.subr.mxu0 0.0
  %657 = vmatpush1.msra.mxu0 0.0
  %658 = vmatprep.subr.mxu0 0.0
  %659 = vmatpush1.msra.mxu0 0.0
  %660 = vmatprep.subr.mxu0 0.0
  %661 = vmatpush1.msra.mxu0 0.0
  %662 = vmatprep.subr.mxu0 0.0
  %663 = vmatpush1.msra.mxu0 0.0
  %664 = vmatprep.subr.mxu0 0.0
  %665 = vmatpush1.msra.mxu0 0.0
  %666 = vmatprep.subr.mxu0 0.0
  %667 = vmatpush1.msra.mxu0 0.0
  %668 = vmatprep.subr.mxu0 0.0
  %669 = vmatpush1.msra.mxu0 0.0
  %670 = vmatprep.subr.mxu0 0.0
  %671 = vmatpush1.msra.mxu0 0.0
  %672 = vmatprep.subr.mxu0 0.0
  %673 = vmatpush1.msra.mxu0 0.0
  %674 = vmatprep.subr.mxu0 0.0
  %675 = vmatpush1.msra.mxu0 0.0
  %676 = vmatprep.subr.mxu0 0.0
  %677 = vmatpush1.msra.mxu0 0.0
  %678 = vmatprep.subr.mxu0 0.0
  %679 = vmatpush1.msra.mxu0 0.0
  %680 = vmatprep.subr.mxu0 0.0
  %681 = vmatpush1.msra.mxu0 0.0
  %682 = vmatprep.subr.mxu0 0.0
  %683 = vmatpush1.msra.mxu0 0.0
  %684 = vmatprep.subr.mxu0 0.0
  %685 = vmatpush1.msra.mxu0 0.0
  %686 = vmatprep.subr.mxu0 0.0
  %687 = vmatpush1.msra.mxu0 0.0
  %688 = vmatprep.subr.mxu0 0.0
  %689 = vmatpush1.msra.mxu0 0.0
  %690 = vmatprep.subr.mxu0 0.0
  %691 = vmatpush1.msra.mxu0 0.0
  %692 = vmatprep.subr.mxu0 0.0
  %693 = vmatpush1.msra.mxu0 0.0
  %694 = vmatprep.subr.mxu0 0.0
  %695 = vmatpush1.msra.mxu0 0.0
  %696 = vmatprep.subr.mxu0 0.0
  %697 = vmatpush1.msra.mxu0 0.0
  %698 = vmatprep.subr.mxu0 0.0
  %699 = vmatpush1.msra.mxu0 0.0
  %700 = vmatprep.subr.mxu0 0.0
  %701 = vmatpush1.msra.mxu0 0.0
  %702 = vmatprep.subr.mxu0 0.0
  %703 = vmatpush1.msra.mxu0 0.0
  %704 = vmatprep.subr.mxu0 0.0
  %705 = vmatpush1.msra.mxu0 0.0
  %706 = vmatprep.subr.mxu0 0.0
  %707 = vmatpush1.msra.mxu0 0.0
  %708 = vmatprep.subr.mxu0 0.0
  %709 = vmatpush1.msra.mxu0 0.0
  %710 = vmatprep.subr.mxu0 0.0
  %711 = vmatpush1.msra.mxu0 0.0
  %712 = vmatprep.mubr.f32.mxu0 0.0
  %713 = vmatmul.mubr.f32.gmra.mrb[0].mxu0 %v36
  %v714 = vpop.f32.mrb[0].mxu0
  %v715 = vadd.f32 0.0, %v714
  %v716 = vpop.f32.mrb[0].mxu0
  %717 = vmatprep.mubr.f32.mxu0 0.0
  %718 = vmatmul.mubr.f32.gmra.mrb[0].mxu0 %v39
  %v719 = vpop.f32.mrb[0].mxu0
  %v720 = vadd.f32 0.0, %v719
  %v721 = vpop.f32.mrb[0].mxu0
  %722 = vmatprep.mubr.f32.mxu0 0.0
  %723 = vmatmul.mubr.f32.gmra.mrb[0].mxu0 %v42
  %v724 = vpop.f32.mrb[0].mxu0
  %v725 = vadd.f32 0.0, %v724
  %v726 = vpop.f32.mrb[0].mxu0
  %727 = vmatprep.mubr.f32.mxu0 0.0
  %728 = vmatmul.mubr.f32.gmra.mrb[0].mxu0 %v45
  %v729 = vpop.f32.mrb[0].mxu0
  %v730 = vadd.f32 0.0, %v729
  %v731 = vpop.f32.mrb[0].mxu0
  %732 = vdwg.mxu0
  %s733 = scalar_lea.vmem %s3, 128
  %v734 = vld [vmem:[%s733] sm:$0xff]
  %v735 = vld [vmem:[%s733 + $0x8] sm:$0xff]
  %v736 = vld [vmem:[%s733 + $0x10] sm:$0xff]
  %v737 = vld [vmem:[%s733 + $0x18] sm:$0xff]
  %v738 = vld [vmem:[%s733 + $0x20] sm:$0xff]
  %v739 = vld [vmem:[%s733 + $0x28] sm:$0xff]
  %v740 = vld [vmem:[%s733 + $0x30] sm:$0xff]
  %v741 = vld [vmem:[%s733 + $0x38] sm:$0xff]
  %v742 = vld [vmem:[%s4 + $0x2] sm:$0x1]
  %v744 = vsel %vm34, %v644, 0
  %v747 = vsel %vm34, %v645, 0
  %v750 = vsel %vm34, %v646, 0
  %v753 = vsel %vm34, %v647, 0
  %755 = vmatprep.subr.mxu0 0.0
  %756 = vmatpush1.msra.mxu0 %v738
  %757 = vmatprep.subr.mxu0 0.0
  %758 = vmatpush1.msra.mxu0 %v739
  %759 = vmatprep.subr.mxu0 0.0
  %760 = vmatpush1.msra.mxu0 %v740
  %761 = vmatprep.subr.mxu0 0.0
  %762 = vmatpush1.msra.mxu0 %v741
  %763 = vmatprep.subr.mxu0 0.0
  %764 = vmatpush1.msra.mxu0 0.0
  %765 = vmatprep.subr.mxu0 0.0
  %766 = vmatpush1.msra.mxu0 0.0
  %767 = vmatprep.subr.mxu0 0.0
  %768 = vmatpush1.msra.mxu0 0.0
  %769 = vmatprep.subr.mxu0 0.0
  %770 = vmatpush1.msra.mxu0 0.0
  %771 = vmatprep.subr.mxu0 0.0
  %772 = vmatpush1.msra.mxu0 0.0
  %773 = vmatprep.subr.mxu0 0.0
  %774 = vmatpush1.msra.mxu0 0.0
  %775 = vmatprep.subr.mxu0 0.0
  %776 = vmatpush1.msra.mxu0 0.0
  %777 = vmatprep.subr.mxu0 0.0
  %778 = vmatpush1.msra.mxu0 0.0
  %779 = vmatprep.subr.mxu0 0.0
  %780 = vmatpush1.msra.mxu0 0.0
  %781 = vmatprep.subr.mxu0 0.0
  %782 = vmatpush1.msra.mxu0 0.0
  %783 = vmatprep.subr.mxu0 0.0
  %784 = vmatpush1.msra.mxu0 0.0
  %785 = vmatprep.subr.mxu0 0.0
  %786 = vmatpush1.msra.mxu0 0.0
  %787 = vmatprep.subr.mxu0 0.0
  %788 = vmatpush1.msra.mxu0 0.0
  %789 = vmatprep.subr.mxu0 0.0
  %790 = vmatpush1.msra.mxu0 0.0
  %791 = vmatprep.subr.mxu0 0.0
  %792 = vmatpush1.msra.mxu0 0.0
  %793 = vmatprep.subr.mxu0 0.0
  %794 = vmatpush1.msra.mxu0 0.0
  %795 = vmatprep.subr.mxu0 0.0
  %796 = vmatpush1.msra.mxu0 0.0
  %797 = vmatprep.subr.mxu0 0.0
  %798 = vmatpush1.msra.mxu0 0.0
  %799 = vmatprep.subr.mxu0 0.0
  %800 = vmatpush1.msra.mxu0 0.0
  %801 = vmatprep.subr.mxu0 0.0
  %802 = vmatpush1.msra.mxu0 0.0
  %803 = vmatprep.subr.mxu0 0.0
  %804 = vmatpush1.msra.mxu0 0.0
  %805 = vmatprep.subr.mxu0 0.0
  %806 = vmatpush1.msra.mxu0 0.0
  %807 = vmatprep.subr.mxu0 0.0
  %808 = vmatpush1.msra.mxu0 0.0
  %809 = vmatprep.subr.mxu0 0.0
  %810 = vmatpush1.msra.mxu0 0.0
  %811 = vmatprep.subr.mxu0 0.0
  %812 = vmatpush1.msra.mxu0 0.0
  %813 = vmatprep.subr.mxu0 0.0
  %814 = vmatpush1.msra.mxu0 0.0
  %815 = vmatprep.subr.mxu0 0.0
  %816 = vmatpush1.msra.mxu0 0.0
  %817 = vmatprep.subr.mxu0 0.0
  %818 = vmatpush1.msra.mxu0 0.0
  %819 = vmatprep.mubr.f32.mxu0 0.0
  %820 = vmatmul.mubr.f32.gmra.mrb[0].mxu0 %v744
  %v821 = vpop.f32.mrb[0].mxu0
  %v822 = vadd.f32 0.0, %v821
  %v823 = vpop.f32.mrb[0].mxu0
  %824 = vmatprep.mubr.f32.mxu0 0.0
  %825 = vmatmul.mubr.f32.gmra.mrb[0].mxu0 %v747
  %v826 = vpop.f32.mrb[0].mxu0
  %v827 = vadd.f32 0.0, %v826
  %v828 = vpop.f32.mrb[0].mxu0
  %829 = vmatprep.mubr.f32.mxu0 0.0
  %830 = vmatmul.mubr.f32.gmra.mrb[0].mxu0 %v750
  %v831 = vpop.f32.mrb[0].mxu0
  %v832 = vadd.f32 0.0, %v831
  %v833 = vpop.f32.mrb[0].mxu0
  %834 = vmatprep.mubr.f32.mxu0 0.0
  %835 = vmatmul.mubr.f32.gmra.mrb[0].mxu0 %v753
  %v836 = vpop.f32.mrb[0].mxu0
  %v837 = vadd.f32 0.0, %v836
  %v838 = vpop.f32.mrb[0].mxu0
  %839 = vdwg.mxu0
  %v841 = vsel %vm34, %v715, 0
  %v844 = vsel %vm34, %v720, 0
  %v847 = vsel %vm34, %v725, 0
  %v850 = vsel %vm34, %v730, 0
  %852 = vmatprep.subr.mxu0 0.0
  %853 = vmatpush1.msra.mxu0 %v734
  %854 = vmatprep.subr.mxu0 0.0
  %855 = vmatpush1.msra.mxu0 %v735
  %856 = vmatprep.subr.mxu0 0.0
  %857 = vmatpush1.msra.mxu0 %v736
  %858 = vmatprep.subr.mxu0 0.0
  %859 = vmatpush1.msra.mxu0 %v737
  %860 = vmatprep.subr.mxu0 0.0
  %861 = vmatpush1.msra.mxu0 0.0
  %862 = vmatprep.subr.mxu0 0.0
  %863 = vmatpush1.msra.mxu0 0.0
  %864 = vmatprep.subr.mxu0 0.0
  %865 = vmatpush1.msra.mxu0 0.0
  %866 = vmatprep.subr.mxu0 0.0
  %867 = vmatpush1.msra.mxu0 0.0
  %868 = vmatprep.subr.mxu0 0.0
  %869 = vmatpush1.msra.mxu0 0.0
  %870 = vmatprep.subr.mxu0 0.0
  %871 = vmatpush1.msra.mxu0 0.0
  %872 = vmatprep.subr.mxu0 0.0
  %873 = vmatpush1.msra.mxu0 0.0
  %874 = vmatprep.subr.mxu0 0.0
  %875 = vmatpush1.msra.mxu0 0.0
  %876 = vmatprep.subr.mxu0 0.0
  %877 = vmatpush1.msra.mxu0 0.0
  %878 = vmatprep.subr.mxu0 0.0
  %879 = vmatpush1.msra.mxu0 0.0
  %880 = vmatprep.subr.mxu0 0.0
  %881 = vmatpush1.msra.mxu0 0.0
  %882 = vmatprep.subr.mxu0 0.0
  %883 = vmatpush1.msra.mxu0 0.0
  %884 = vmatprep.subr.mxu0 0.0
  %885 = vmatpush1.msra.mxu0 0.0
  %886 = vmatprep.subr.mxu0 0.0
  %887 = vmatpush1.msra.mxu0 0.0
  %888 = vmatprep.subr.mxu0 0.0
  %889 = vmatpush1.msra.mxu0 0.0
  %890 = vmatprep.subr.mxu0 0.0
  %891 = vmatpush1.msra.mxu0 0.0
  %892 = vmatprep.subr.mxu0 0.0
  %893 = vmatpush1.msra.mxu0 0.0
  %894 = vmatprep.subr.mxu0 0.0
  %895 = vmatpush1.msra.mxu0 0.0
  %896 = vmatprep.subr.mxu0 0.0
  %897 = vmatpush1.msra.mxu0 0.0
  %898 = vmatprep.subr.mxu0 0.0
  %899 = vmatpush1.msra.mxu0 0.0
  %900 = vmatprep.subr.mxu0 0.0
  %901 = vmatpush1.msra.mxu0 0.0
  %902 = vmatprep.subr.mxu0 0.0
  %903 = vmatpush1.msra.mxu0 0.0
  %904 = vmatprep.subr.mxu0 0.0
  %905 = vmatpush1.msra.mxu0 0.0
  %906 = vmatprep.subr.mxu0 0.0
  %907 = vmatpush1.msra.mxu0 0.0
  %908 = vmatprep.subr.mxu0 0.0
  %909 = vmatpush1.msra.mxu0 0.0
  %910 = vmatprep.subr.mxu0 0.0
  %911 = vmatpush1.msra.mxu0 0.0
  %912 = vmatprep.subr.mxu0 0.0
  %913 = vmatpush1.msra.mxu0 0.0
  %914 = vmatprep.subr.mxu0 0.0
  %915 = vmatpush1.msra.mxu0 0.0
  %916 = vmatprep.mubr.f32.mxu0 0.0
  %917 = vmatmul.mubr.f32.gmra.mrb[0].mxu0 %v841
  %v918 = vpop.f32.mrb[0].mxu0
  %v919 = vadd.f32 %v822, %v918
  %v920 = vpop.f32.mrb[0].mxu0
  %921 = vmatprep.mubr.f32.mxu0 0.0
  %922 = vmatmul.mubr.f32.gmra.mrb[0].mxu0 %v844
  %v923 = vpop.f32.mrb[0].mxu0
  %v924 = vadd.f32 %v827, %v923
  %v925 = vpop.f32.mrb[0].mxu0
  %926 = vmatprep.mubr.f32.mxu0 0.0
  %927 = vmatmul.mubr.f32.gmra.mrb[0].mxu0 %v847
  %v928 = vpop.f32.mrb[0].mxu0
  %v929 = vadd.f32 %v832, %v928
  %v930 = vpop.f32.mrb[0].mxu0
  %931 = vmatprep.mubr.f32.mxu0 0.0
  %932 = vmatmul.mubr.f32.gmra.mrb[0].mxu0 %v850
  %v933 = vpop.f32.mrb[0].mxu0
  %v934 = vadd.f32 %v837, %v933
  %v935 = vpop.f32.mrb[0].mxu0
  %936 = vdwg.mxu0
  %v937 = vlaneseq
  %v938 = vshrl.u32 %v937, 7
  %v939 = vsub.s32 0, %v938
  %v940 = vrot.slane %v742, %v939
  %v941 = vadd.f32 %v919, %v940
  %v942 = vadd.f32 %v924, %v940
  %v943 = vadd.f32 %v929, %v940
  %v944 = vadd.f32 %v934, %v940
  %v945 = vmax.f32 %v941, 0.0
  %v946 = vmax.f32 %v942, 0.0
  %v947 = vmax.f32 %v943, 0.0
  %v948 = vmax.f32 %v944, 0.0
  %949 = vmatprep.subr.mxu0 0.0
  %950 = vmatpush1.msra.mxu0 %v945
  %951 = vmatprep.subr.mxu0 0.0
  %952 = vmatpush1.msra.mxu0 %v946
  %953 = vmatprep.subr.mxu0 0.0
  %954 = vmatpush1.msra.mxu0 %v947
  %955 = vmatprep.subr.mxu0 0.0
  %956 = vmatpush1.msra.mxu0 %v948
  %957 = vmatprep.subr.mxu0 0.0
  %958 = vmatpush1.msra.mxu0 0.0
  %959 = vmatprep.subr.mxu0 0.0
  %960 = vmatpush1.msra.mxu0 0.0
  %961 = vmatprep.subr.mxu0 0.0
  %962 = vmatpush1.msra.mxu0 0.0
  %963 = vmatprep.subr.mxu0 0.0
  %964 = vmatpush1.msra.mxu0 0.0
  %965 = vmatprep.subr.mxu0 0.0
  %966 = vmatpush1.msra.mxu0 0.0
  %967 = vmatprep.subr.mxu0 0.0
  %968 = vmatpush1.msra.mxu0 0.0
  %969 = vmatprep.subr.mxu0 0.0
  %970 = vmatpush1.msra.mxu0 0.0
  %971 = vmatprep.subr.mxu0 0.0
  %972 = vmatpush1.msra.mxu0 0.0
  %973 = vmatprep.subr.mxu0 0.0
  %974 = vmatpush1.msra.mxu0 0.0
  %975 = vmatprep.subr.mxu0 0.0
  %976 = vmatpush1.msra.mxu0 0.0
  %977 = vmatprep.subr.mxu0 0.0
  %978 = vmatpush1.msra.mxu0 0.0
  %979 = vmatprep.subr.mxu0 0.0
  %980 = vmatpush1.msra.mxu0 0.0
  %981 = vmatprep.subr.mxu0 0.0
  %982 = vmatpush1.msra.mxu0 0.0
  %983 = vmatprep.subr.mxu0 0.0
  %984 = vmatpush1.msra.mxu0 0.0
  %985 = vmatprep.subr.mxu0 0.0
  %986 = vmatpush1.msra.mxu0 0.0
  %987 = vmatprep.subr.mxu0 0.0
  %988 = vmatpush1.msra.mxu0 0.0
  %989 = vmatprep.subr.mxu0 0.0
  %990 = vmatpush1.msra.mxu0 0.0
  %991 = vmatprep.subr.mxu0 0.0
  %992 = vmatpush1.msra.mxu0 0.0
  %993 = vmatprep.subr.mxu0 0.0
  %994 = vmatpush1.msra.mxu0 0.0
  %995 = vmatprep.subr.mxu0 0.0
  %996 = vmatpush1.msra.mxu0 0.0
  %997 = vmatprep.subr.mxu0 0.0
  %998 = vmatpush1.msra.mxu0 0.0
  %999 = vmatprep.subr.mxu0 0.0
  %1000 = vmatpush1.msra.mxu0 0.0
  %1001 = vmatprep.subr.mxu0 0.0
  %1002 = vmatpush1.msra.mxu0 0.0
  %1003 = vmatprep.subr.mxu0 0.0
  %1004 = vmatpush1.msra.mxu0 0.0
  %1005 = vmatprep.subr.mxu0 0.0
  %1006 = vmatpush1.msra.mxu0 0.0
  %1007 = vmatprep.subr.mxu0 0.0
  %1008 = vmatpush1.msra.mxu0 0.0
  %1009 = vmatprep.subr.mxu0 0.0
  %1010 = vmatpush1.msra.mxu0 0.0
  %1011 = vmatprep.subr.mxu0 0.0
  %1012 = vmatpush1.msra.mxu0 0.0
  %1013 = vmatprep.mubr.f32.mxu0 0.0
  %1014 = vmatmul.mubr.f32.gmra.mrb[0].mxu0 %v36
  %v1015 = vpop.f32.mrb[0].mxu0
  %v1016 = vadd.f32 0.0, %v1015
  %v1017 = vpop.f32.mrb[0].mxu0
  %1018 = vmatprep.mubr.f32.mxu0 0.0
  %1019 = vmatmul.mubr.f32.gmra.mrb[0].mxu0 %v39
  %v1020 = vpop.f32.mrb[0].mxu0
  %v1021 = vadd.f32 0.0, %v1020
  %v1022 = vpop.f32.mrb[0].mxu0
  %1023 = vmatprep.mubr.f32.mxu0 0.0
  %1024 = vmatmul.mubr.f32.gmra.mrb[0].mxu0 %v42
  %v1025 = vpop.f32.mrb[0].mxu0
  %v1026 = vadd.f32 0.0, %v1025
  %v1027 = vpop.f32.mrb[0].mxu0
  %1028 = vmatprep.mubr.f32.mxu0 0.0
  %1029 = vmatmul.mubr.f32.gmra.mrb[0].mxu0 %v45
  %v1030 = vpop.f32.mrb[0].mxu0
  %v1031 = vadd.f32 0.0, %v1030
  %v1032 = vpop.f32.mrb[0].mxu0
  %1033 = vdwg.mxu0
  %s1034 = scalar_lea.vmem %s3, 192
  %v1035 = vld [vmem:[%s1034] sm:$0xff]
  %v1036 = vld [vmem:[%s1034 + $0x8] sm:$0xff]
  %v1037 = vld [vmem:[%s1034 + $0x10] sm:$0xff]
  %v1038 = vld [vmem:[%s1034 + $0x18] sm:$0xff]
  %v1039 = vld [vmem:[%s1034 + $0x20] sm:$0xff]
  %v1040 = vld [vmem:[%s1034 + $0x28] sm:$0xff]
  %v1041 = vld [vmem:[%s1034 + $0x30] sm:$0xff]
  %v1042 = vld [vmem:[%s1034 + $0x38] sm:$0xff]
  %v1043 = vld [vmem:[%s4 + $0x3] sm:$0x1]
  %v1045 = vsel %vm34, %v945, 0
  %v1048 = vsel %vm34, %v946, 0
  %v1051 = vsel %vm34, %v947, 0
  %v1054 = vsel %vm34, %v948, 0
  %1056 = vmatprep.subr.mxu0 0.0
  %1057 = vmatpush1.msra.mxu0 %v1039
  %1058 = vmatprep.subr.mxu0 0.0
  %1059 = vmatpush1.msra.mxu0 %v1040
  %1060 = vmatprep.subr.mxu0 0.0
  %1061 = vmatpush1.msra.mxu0 %v1041
  %1062 = vmatprep.subr.mxu0 0.0
  %1063 = vmatpush1.msra.mxu0 %v1042
  %1064 = vmatprep.subr.mxu0 0.0
  %1065 = vmatpush1.msra.mxu0 0.0
  %1066 = vmatprep.subr.mxu0 0.0
  %1067 = vmatpush1.msra.mxu0 0.0
  %1068 = vmatprep.subr.mxu0 0.0
  %1069 = vmatpush1.msra.mxu0 0.0
  %1070 = vmatprep.subr.mxu0 0.0
  %1071 = vmatpush1.msra.mxu0 0.0
  %1072 = vmatprep.subr.mxu0 0.0
  %1073 = vmatpush1.msra.mxu0 0.0
  %1074 = vmatprep.subr.mxu0 0.0
  %1075 = vmatpush1.msra.mxu0 0.0
  %1076 = vmatprep.subr.mxu0 0.0
  %1077 = vmatpush1.msra.mxu0 0.0
  %1078 = vmatprep.subr.mxu0 0.0
  %1079 = vmatpush1.msra.mxu0 0.0
  %1080 = vmatprep.subr.mxu0 0.0
  %1081 = vmatpush1.msra.mxu0 0.0
  %1082 = vmatprep.subr.mxu0 0.0
  %1083 = vmatpush1.msra.mxu0 0.0
  %1084 = vmatprep.subr.mxu0 0.0
  %1085 = vmatpush1.msra.mxu0 0.0
  %1086 = vmatprep.subr.mxu0 0.0
  %1087 = vmatpush1.msra.mxu0 0.0
  %1088 = vmatprep.subr.mxu0 0.0
  %1089 = vmatpush1.msra.mxu0 0.0
  %1090 = vmatprep.subr.mxu0 0.0
  %1091 = vmatpush1.msra.mxu0 0.0
  %1092 = vmatprep.subr.mxu0 0.0
  %1093 = vmatpush1.msra.mxu0 0.0
  %1094 = vmatprep.subr.mxu0 0.0
  %1095 = vmatpush1.msra.mxu0 0.0
  %1096 = vmatprep.subr.mxu0 0.0
  %1097 = vmatpush1.msra.mxu0 0.0
  %1098 = vmatprep.subr.mxu0 0.0
  %1099 = vmatpush1.msra.mxu0 0.0
  %1100 = vmatprep.subr.mxu0 0.0
  %1101 = vmatpush1.msra.mxu0 0.0
  %1102 = vmatprep.subr.mxu0 0.0
  %1103 = vmatpush1.msra.mxu0 0.0
  %1104 = vmatprep.subr.mxu0 0.0
  %1105 = vmatpush1.msra.mxu0 0.0
  %1106 = vmatprep.subr.mxu0 0.0
  %1107 = vmatpush1.msra.mxu0 0.0
  %1108 = vmatprep.subr.mxu0 0.0
  %1109 = vmatpush1.msra.mxu0 0.0
  %1110 = vmatprep.subr.mxu0 0.0
  %1111 = vmatpush1.msra.mxu0 0.0
  %1112 = vmatprep.subr.mxu0 0.0
  %1113 = vmatpush1.msra.mxu0 0.0
  %1114 = vmatprep.subr.mxu0 0.0
  %1115 = vmatpush1.msra.mxu0 0.0
  %1116 = vmatprep.subr.mxu0 0.0
  %1117 = vmatpush1.msra.mxu0 0.0
  %1118 = vmatprep.subr.mxu0 0.0
  %1119 = vmatpush1.msra.mxu0 0.0
  %1120 = vmatprep.mubr.f32.mxu0 0.0
  %1121 = vmatmul.mubr.f32.gmra.mrb[0].mxu0 %v1045
  %v1122 = vpop.f32.mrb[0].mxu0
  %v1123 = vadd.f32 0.0, %v1122
  %v1124 = vpop.f32.mrb[0].mxu0
  %1125 = vmatprep.mubr.f32.mxu0 0.0
  %1126 = vmatmul.mubr.f32.gmra.mrb[0].mxu0 %v1048
  %v1127 = vpop.f32.mrb[0].mxu0
  %v1128 = vadd.f32 0.0, %v1127
  %v1129 = vpop.f32.mrb[0].mxu0
  %1130 = vmatprep.mubr.f32.mxu0 0.0
  %1131 = vmatmul.mubr.f32.gmra.mrb[0].mxu0 %v1051
  %v1132 = vpop.f32.mrb[0].mxu0
  %v1133 = vadd.f32 0.0, %v1132
  %v1134 = vpop.f32.mrb[0].mxu0
  %1135 = vmatprep.mubr.f32.mxu0 0.0
  %1136 = vmatmul.mubr.f32.gmra.mrb[0].mxu0 %v1054
  %v1137 = vpop.f32.mrb[0].mxu0
  %v1138 = vadd.f32 0.0, %v1137
  %v1139 = vpop.f32.mrb[0].mxu0
  %1140 = vdwg.mxu0
  %v1142 = vsel %vm34, %v1016, 0
  %v1145 = vsel %vm34, %v1021, 0
  %v1148 = vsel %vm34, %v1026, 0
  %v1151 = vsel %vm34, %v1031, 0
  %1153 = vmatprep.subr.mxu0 0.0
  %1154 = vmatpush1.msra.mxu0 %v1035
  %1155 = vmatprep.subr.mxu0 0.0
  %1156 = vmatpush1.msra.mxu0 %v1036
  %1157 = vmatprep.subr.mxu0 0.0
  %1158 = vmatpush1.msra.mxu0 %v1037
  %1159 = vmatprep.subr.mxu0 0.0
  %1160 = vmatpush1.msra.mxu0 %v1038
  %1161 = vmatprep.subr.mxu0 0.0
  %1162 = vmatpush1.msra.mxu0 0.0
  %1163 = vmatprep.subr.mxu0 0.0
  %1164 = vmatpush1.msra.mxu0 0.0
  %1165 = vmatprep.subr.mxu0 0.0
  %1166 = vmatpush1.msra.mxu0 0.0
  %1167 = vmatprep.subr.mxu0 0.0
  %1168 = vmatpush1.msra.mxu0 0.0
  %1169 = vmatprep.subr.mxu0 0.0
  %1170 = vmatpush1.msra.mxu0 0.0
  %1171 = vmatprep.subr.mxu0 0.0
  %1172 = vmatpush1.msra.mxu0 0.0
  %1173 = vmatprep.subr.mxu0 0.0
  %1174 = vmatpush1.msra.mxu0 0.0
  %1175 = vmatprep.subr.mxu0 0.0
  %1176 = vmatpush1.msra.mxu0 0.0
  %1177 = vmatprep.subr.mxu0 0.0
  %1178 = vmatpush1.msra.mxu0 0.0
  %1179 = vmatprep.subr.mxu0 0.0
  %1180 = vmatpush1.msra.mxu0 0.0
  %1181 = vmatprep.subr.mxu0 0.0
  %1182 = vmatpush1.msra.mxu0 0.0
  %1183 = vmatprep.subr.mxu0 0.0
  %1184 = vmatpush1.msra.mxu0 0.0
  %1185 = vmatprep.subr.mxu0 0.0
  %1186 = vmatpush1.msra.mxu0 0.0
  %1187 = vmatprep.subr.mxu0 0.0
  %1188 = vmatpush1.msra.mxu0 0.0
  %1189 = vmatprep.subr.mxu0 0.0
  %1190 = vmatpush1.msra.mxu0 0.0
  %1191 = vmatprep.subr.mxu0 0.0
  %1192 = vmatpush1.msra.mxu0 0.0
  %1193 = vmatprep.subr.mxu0 0.0
  %1194 = vmatpush1.msra.mxu0 0.0
  %1195 = vmatprep.subr.mxu0 0.0
  %1196 = vmatpush1.msra.mxu0 0.0
  %1197 = vmatprep.subr.mxu0 0.0
  %1198 = vmatpush1.msra.mxu0 0.0
  %1199 = vmatprep.subr.mxu0 0.0
  %1200 = vmatpush1.msra.mxu0 0.0
  %1201 = vmatprep.subr.mxu0 0.0
  %1202 = vmatpush1.msra.mxu0 0.0
  %1203 = vmatprep.subr.mxu0 0.0
  %1204 = vmatpush1.msra.mxu0 0.0
  %1205 = vmatprep.subr.mxu0 0.0
  %1206 = vmatpush1.msra.mxu0 0.0
  %1207 = vmatprep.subr.mxu0 0.0
  %1208 = vmatpush1.msra.mxu0 0.0
  %1209 = vmatprep.subr.mxu0 0.0
  %1210 = vmatpush1.msra.mxu0 0.0
  %1211 = vmatprep.subr.mxu0 0.0
  %1212 = vmatpush1.msra.mxu0 0.0
  %1213 = vmatprep.subr.mxu0 0.0
  %1214 = vmatpush1.msra.mxu0 0.0
  %1215 = vmatprep.subr.mxu0 0.0
  %1216 = vmatpush1.msra.mxu0 0.0
  %1217 = vmatprep.mubr.f32.mxu0 0.0
  %1218 = vmatmul.mubr.f32.gmra.mrb[0].mxu0 %v1142
  %v1219 = vpop.f32.mrb[0].mxu0
  %v1220 = vadd.f32 %v1123, %v1219
  %v1221 = vpop.f32.mrb[0].mxu0
  %1222 = vmatprep.mubr.f32.mxu0 0.0
  %1223 = vmatmul.mubr.f32.gmra.mrb[0].mxu0 %v1145
  %v1224 = vpop.f32.mrb[0].mxu0
  %v1225 = vadd.f32 %v1128, %v1224
  %v1226 = vpop.f32.mrb[0].mxu0
  %1227 = vmatprep.mubr.f32.mxu0 0.0
  %1228 = vmatmul.mubr.f32.gmra.mrb[0].mxu0 %v1148
  %v1229 = vpop.f32.mrb[0].mxu0
  %v1230 = vadd.f32 %v1133, %v1229
  %v1231 = vpop.f32.mrb[0].mxu0
  %1232 = vmatprep.mubr.f32.mxu0 0.0
  %1233 = vmatmul.mubr.f32.gmra.mrb[0].mxu0 %v1151
  %v1234 = vpop.f32.mrb[0].mxu0
  %v1235 = vadd.f32 %v1138, %v1234
  %v1236 = vpop.f32.mrb[0].mxu0
  %1237 = vdwg.mxu0
  %v1238 = vlaneseq
  %v1239 = vshrl.u32 %v1238, 7
  %v1240 = vsub.s32 0, %v1239
  %v1241 = vrot.slane %v1043, %v1240
  %v1242 = vadd.f32 %v1220, %v1241
  %v1243 = vadd.f32 %v1225, %v1241
  %v1244 = vadd.f32 %v1230, %v1241
  %v1245 = vadd.f32 %v1235, %v1241
  %v1246 = vmax.f32 %v1242, 0.0
  %v1247 = vmax.f32 %v1243, 0.0
  %v1248 = vmax.f32 %v1244, 0.0
  %v1249 = vmax.f32 %v1245, 0.0
  %v1250 = vld [vmem:[%s2] sm:$0xff]
  %v1251 = vld [vmem:[%s2 + $0x8] sm:$0xff]
  %v1252 = vld [vmem:[%s2 + $0x10] sm:$0xff]
  %v1253 = vld [vmem:[%s2 + $0x18] sm:$0xff]
  %1255 = vset.pattern.permute.xlu0 0
  %1256 = vperm.xlu0 %1255, %v1250
  %v1257 = vpop.permute.xlu0 %1256
  %1260 = vset.pattern.permute.xlu0 0
  %1261 = vperm.xlu0 %1260, %v1251
  %v1262 = vpop.permute.xlu0 %1261
  %1265 = vset.pattern.permute.xlu0 0
  %1266 = vperm.xlu0 %1265, %v1252
  %v1267 = vpop.permute.xlu0 %1266
  %1270 = vset.pattern.permute.xlu0 0
  %1271 = vperm.xlu0 %1270, %v1253
  %v1272 = vpop.permute.xlu0 %1271
  %v1274 = vadd.f32 %v1246, %v1257
  %v1275 = vadd.f32 %v1247, %v1262
  %v1276 = vadd.f32 %v1248, %v1267
  %v1277 = vadd.f32 %v1249, %v1272
  %v1278 = vsel %vm34, %v1274, -inf
  %v1279 = vsel %vm34, %v1275, -inf
  %v1280 = vsel %vm34, %v1276, -inf
  %v1281 = vsel %vm34, %v1277, -inf
  %v1282 = vmax.f32 %v1278, %v1279
  %v1283 = vmax.f32 %v1280, %v1281
  %v1284 = vmax.f32 %v1282, %v1283
  %v1285 = vrot.slane %v1284, 4
  %v1286 = vmax.f32 %v1284, %v1285
  %v1287 = vrot.slane %v1286, 2
  %v1288 = vmax.f32 %v1286, %v1287
  %v1289 = vrot.slane %v1288, 1
  %v1290 = vmax.f32 %v1288, %v1289
  %1291 = vset.pattern.permute.xlu0 1
  %1292 = vperm.xlu0 %1291, %v1250
  %v1293 = vpop.permute.xlu0 %1292
  %1295 = vset.pattern.permute.xlu0 1
  %1296 = vperm.xlu0 %1295, %v1251
  %v1297 = vpop.permute.xlu0 %1296
  %1299 = vset.pattern.permute.xlu0 1
  %1300 = vperm.xlu0 %1299, %v1252
  %v1301 = vpop.permute.xlu0 %1300
  %1303 = vset.pattern.permute.xlu0 1
  %1304 = vperm.xlu0 %1303, %v1253
  %v1305 = vpop.permute.xlu0 %1304
  %v1307 = vadd.f32 %v1246, %v1293
  %v1308 = vadd.f32 %v1247, %v1297
  %v1309 = vadd.f32 %v1248, %v1301
  %v1310 = vadd.f32 %v1249, %v1305
  %v1311 = vsel %vm34, %v1307, -inf
  %v1312 = vsel %vm34, %v1308, -inf
  %v1313 = vsel %vm34, %v1309, -inf
  %v1314 = vsel %vm34, %v1310, -inf
  %v1315 = vmax.f32 %v1311, %v1312
  %v1316 = vmax.f32 %v1313, %v1314
  %v1317 = vmax.f32 %v1315, %v1316
  %v1318 = vrot.slane %v1317, 4
  %v1319 = vmax.f32 %v1317, %v1318
  %v1320 = vrot.slane %v1319, 2
  %v1321 = vmax.f32 %v1319, %v1320
  %v1322 = vrot.slane %v1321, 1
  %v1323 = vmax.f32 %v1321, %v1322
  %vm1324 = vcmask 1040384
  %v1325 = vsel %vm1324, %v1290, %v1323
  %v1326 = vld [vmem:[%s5] sm:$0xff]
  %v1327 = vld [vmem:[%s5 + $0x8] sm:$0xff]
  %v1328 = vld [vmem:[%s5 + $0x10] sm:$0xff]
  %v1329 = vld [vmem:[%s5 + $0x18] sm:$0xff]
  %v1330 = vld [vmem:[%s5 + $0x20] sm:$0x1]
  %v1331 = vlaneseq
  %v1332 = vshrl.u32 %v1331, 7
  %v1333 = vsub.s32 0, %v1332
  %v1334 = vrot.slane %v1330, %v1333
  %v1336 = vsel %vm34, %v1325, 0
  %1338 = vmatprep.subr.mxu0 0.0
  %1339 = vmatpush1.msra.mxu0 %v1326
  %1340 = vmatprep.subr.mxu0 0.0
  %1341 = vmatpush1.msra.mxu0 %v1327
  %1342 = vmatprep.subr.mxu0 0.0
  %1343 = vmatpush1.msra.mxu0 %v1328
  %1344 = vmatprep.subr.mxu0 0.0
  %1345 = vmatpush1.msra.mxu0 %v1329
  %1346 = vmatprep.subr.mxu0 0.0
  %1347 = vmatpush1.msra.mxu0 0.0
  %1348 = vmatprep.subr.mxu0 0.0
  %1349 = vmatpush1.msra.mxu0 0.0
  %1350 = vmatprep.subr.mxu0 0.0
  %1351 = vmatpush1.msra.mxu0 0.0
  %1352 = vmatprep.subr.mxu0 0.0
  %1353 = vmatpush1.msra.mxu0 0.0
  %1354 = vmatprep.subr.mxu0 0.0
  %1355 = vmatpush1.msra.mxu0 0.0
  %1356 = vmatprep.subr.mxu0 0.0
  %1357 = vmatpush1.msra.mxu0 0.0
  %1358 = vmatprep.subr.mxu0 0.0
  %1359 = vmatpush1.msra.mxu0 0.0
  %1360 = vmatprep.subr.mxu0 0.0
  %1361 = vmatpush1.msra.mxu0 0.0
  %1362 = vmatprep.subr.mxu0 0.0
  %1363 = vmatpush1.msra.mxu0 0.0
  %1364 = vmatprep.subr.mxu0 0.0
  %1365 = vmatpush1.msra.mxu0 0.0
  %1366 = vmatprep.subr.mxu0 0.0
  %1367 = vmatpush1.msra.mxu0 0.0
  %1368 = vmatprep.subr.mxu0 0.0
  %1369 = vmatpush1.msra.mxu0 0.0
  %1370 = vmatprep.subr.mxu0 0.0
  %1371 = vmatpush1.msra.mxu0 0.0
  %1372 = vmatprep.subr.mxu0 0.0
  %1373 = vmatpush1.msra.mxu0 0.0
  %1374 = vmatprep.subr.mxu0 0.0
  %1375 = vmatpush1.msra.mxu0 0.0
  %1376 = vmatprep.subr.mxu0 0.0
  %1377 = vmatpush1.msra.mxu0 0.0
  %1378 = vmatprep.subr.mxu0 0.0
  %1379 = vmatpush1.msra.mxu0 0.0
  %1380 = vmatprep.subr.mxu0 0.0
  %1381 = vmatpush1.msra.mxu0 0.0
  %1382 = vmatprep.subr.mxu0 0.0
  %1383 = vmatpush1.msra.mxu0 0.0
  %1384 = vmatprep.subr.mxu0 0.0
  %1385 = vmatpush1.msra.mxu0 0.0
  %1386 = vmatprep.subr.mxu0 0.0
  %1387 = vmatpush1.msra.mxu0 0.0
  %1388 = vmatprep.subr.mxu0 0.0
  %1389 = vmatpush1.msra.mxu0 0.0
  %1390 = vmatprep.subr.mxu0 0.0
  %1391 = vmatpush1.msra.mxu0 0.0
  %1392 = vmatprep.subr.mxu0 0.0
  %1393 = vmatpush1.msra.mxu0 0.0
  %1394 = vmatprep.subr.mxu0 0.0
  %1395 = vmatpush1.msra.mxu0 0.0
  %1396 = vmatprep.subr.mxu0 0.0
  %1397 = vmatpush1.msra.mxu0 0.0
  %1398 = vmatprep.subr.mxu0 0.0
  %1399 = vmatpush1.msra.mxu0 0.0
  %1400 = vmatprep.subr.mxu0 0.0
  %1401 = vmatpush1.msra.mxu0 0.0
  %1402 = vmatprep.mubr.f32.mxu0 0.0
  %1403 = vmatmul.mubr.f32.gmra.mrb[0].mxu0 %v1336
  %v1404 = vpop.f32.mrb[0].mxu0
  %v1405 = vadd.f32 %v1334, %v1404
  %v1406 = vpop.f32.mrb[0].mxu0
  %1407 = vdwg.mxu0
  %v1408 = vmax.f32 %v1405, 0.0
  %v1409 = vld [vmem:[%s6] sm:$0x1]
  %v1411 = vlaneseq
  %v1412 = vshrl.u32 %v1411, 7
  %v1413 = vsub.s32 0, %v1412
  %v1414 = vrot.slane %v1409, %v1413
  %v1416 = vmul.f32 %v1408, %v1414
  %vm1417 = vcmask 123904
  %v1418 = vsel %vm1417, %v1416, 0.0
  %1419 = vadd.xlane.f32.xlu0 %v1418
  %v1420 = vpop.xlane.xlu0 %1419
  %v1421 = vadd.f32 %v1420, %v1414
  %v1422 = vsub.f32 0.0, %v1421
  %v1423 = vmul.f32 %v1422, 1.442695
  %v1424 = vpow.pop %v1423
  %v1425 = vadd.f32 %v1424, 1.0
  %v1426 = vrcp.pop %v1425
  %v1427 = vmul.f32 1.0, %v1426
  %1429 = vrot.lane.b32.xlu0 %v1427, 112
  %v1430 = vpop.permute.xlu0 %1429
  %vm1432 = vcmask 1024
  %1433 = vst.msk [vmem:[%s7] sm:$0x3] %vm1432, %v1430
  // Predicated region
  $region30: #{tpu_custom_call.1} parent=0 // pred_check
    _
  $region31: #{tpu_custom_call.1} parent=0 // pred_check_branch
    %1435 = sbr.rel (0) target = $region33
  $region32: #{tpu_custom_call.1} parent=0 // pred_region
    _
  $region33: #{tpu_custom_call.1} parent=0 // pred_fallthru
    _
  // Predicated region
  $region34: #{tpu_custom_call.1} parent=0 // pred_check
    _
  $region35: #{tpu_custom_call.1} parent=0 // pred_check_branch
    %1437 = sbr.rel (0) target = $region37
  $region36: #{tpu_custom_call.1} parent=0 // pred_region
    _
  $region37: #{tpu_custom_call.1} parent=0 // pred_fallthru
    _

</llo_original>
